<compile_context>
chip_gen: v6e
topology: v6e:2x2x1
jax: 0.10.0
libtpu: 0.0.40
codegen_flags: <defaults>
</compile_context>

<pallas_src>
import functools

import jax
import jax.numpy as jnp
from jax.experimental import pallas as pl
from jax.experimental.pallas import tpu as pltpu


# --------------------------------------------------------------------------
# Kernel
# --------------------------------------------------------------------------
def poly_encoder_kernel(emb_ref, emb_b_ref, poly_ref, out_ref,
                        e_acc, eb_acc, *, inv_seq_len):
    # emb_ref   : (B_TILE, n_sent_ctx, s_chunk, dim)   native input dtype
    # emb_b_ref : (B_TILE, max_n_sent, s_chunk, dim)
    # poly_ref  : (poly_m, dim)                        native weight dtype
    # out_ref   : (1, B_TILE, max_n_sent)              f32
    # e_acc     : (B_TILE, n_sent_ctx, dim)            f32 scratch (seq-sum)
    # eb_acc    : (B_TILE, max_n_sent, dim)            f32 scratch (seq-sum)
    s = pl.program_id(1)

    @pl.when(s == 0)
    def _init():
        e_acc[...] = jnp.zeros_like(e_acc)
        eb_acc[...] = jnp.zeros_like(eb_acc)

    # Accumulate the seq_len sum of this chunk in f32 (sum-then-scale mean).
    # Inputs are streamed in their native dtype; for f32 inputs the astype is a
    # no-op (no bf16 round-trip copy in the wrapper).
    e_acc[...] += jnp.sum(emb_ref[...].astype(jnp.float32), axis=2)
    eb_acc[...] += jnp.sum(emb_b_ref[...].astype(jnp.float32), axis=2)

    @pl.when(s == pl.num_programs(1) - 1)
    def _finalize():
        e = e_acc[...] * inv_seq_len          # [B, L, D] == torch.mean(emb, 2)
        eb = eb_acc[...] * inv_seq_len        # [B, S, D] == torch.mean(emb_b, 2)
        bt, n_l, d = e.shape

        # bf16 operands for the MXU, f32 accumulation everywhere.
        e_bf = e.astype(jnp.bfloat16)
        eb_bf = eb.astype(jnp.bfloat16)
        poly_bf = poly_ref[...].astype(jnp.bfloat16)          # [P, D]

        # --- dot_attention(poly_codes, emb, emb) ---------------------------
        # poly is shared across the batch: one flat [B*L, D] x [D, P] matmul
        # instead of broadcasting poly B times into tiny batched matmuls.
        logits1 = jnp.dot(e_bf.reshape(bt * n_l, d), poly_bf.T,
                          preferred_element_type=jnp.float32)
        logits1 = logits1.reshape(bt, n_l, -1)                # [B, L, P]
        # softmax over L (== softmax over last dim of the [B, P, L] layout).
        m1 = jnp.max(logits1, axis=1, keepdims=True)
        ex1 = jnp.exp(logits1 - m1)
        w1 = ex1 / jnp.sum(ex1, axis=1, keepdims=True)        # [B, L, P]
        cont = jnp.einsum("blp,bld->bpd", w1.astype(jnp.bfloat16), e_bf,
                          preferred_element_type=jnp.float32)  # [B, P, D]
        cont_bf = cont.astype(jnp.bfloat16)

        # --- dot_attention(emb_b, cont_embs, cont_embs) --------------------
        logits2 = jnp.einsum("bsd,bpd->bsp", eb_bf, cont_bf,
                             preferred_element_type=jnp.float32)  # [B, S, P]
        m2 = jnp.max(logits2, axis=-1, keepdims=True)
        ex2 = jnp.exp(logits2 - m2)
        w2 = ex2 / jnp.sum(ex2, axis=-1, keepdims=True)
        ctx = jnp.einsum("bsp,bpd->bsd", w2.astype(jnp.bfloat16), cont_bf,
                         preferred_element_type=jnp.float32)   # [B, S, D]

        # dot_product = (ctx_emb * emb_b).sum(-1)
        out_ref[...] = jnp.sum(ctx * eb, axis=-1)[None]        # [1, B, S]
    # TODO(synk): the reference also computes an unused CosineSimilarity and an
    # optional labels-driven loss; only the labels=None return path is kernelized.


# --------------------------------------------------------------------------
# Wrapper / tiling
# --------------------------------------------------------------------------
def _vmem_capacity_bytes():
    try:
        info = pltpu.get_tpu_info()
        cap = getattr(info, "vmem_capacity_bytes", None)
        if cap:
            return int(cap)
    except Exception:
        pass
    return 64 * 1024 * 1024   # conservative default (v7x-sized); v5e/v6e have 128 MiB


def _is_v7x():
    try:
        kind = jax.devices()[0].device_kind.lower()
    except Exception:
        return False
    return ("v7" in kind) or ("7x" in kind)


def _divisors_desc(n):
    return [d for d in range(n, 0, -1) if n % d == 0]


def _seq_chunks_desc(seq_len):
    # s_chunk is the second-to-last block dim: must be a multiple of 8 or the
    # full seq_len; restricting to divisors avoids any seq padding.
    return [c for c in range(seq_len, 0, -1)
            if seq_len % c == 0 and (c == seq_len or c % 8 == 0)]


def poly_encoder_forward(emb, emb_b, poly_weight):
    bs, n_sent_ctx, seq_len, dim = emb.shape
    bs_b, max_n_sent, seq_len_b, dim_b = emb_b.shape
    assert bs_b == bs and seq_len_b == seq_len and dim_b == dim
    poly_m, dim_p = poly_weight.shape
    assert dim_p == dim

    itemsize = jnp.dtype(emb.dtype).itemsize

    # --- VMEM sizing per chip generation ------------------------------------
    vmem_cap = _vmem_capacity_bytes()
    vmem_budget = int(0.55 * vmem_cap)                       # tile-search budget
    vmem_limit = min(int(0.75 * vmem_cap), vmem_cap - 8 * 1024 * 1024)

    v7x = _is_v7x()

    def step_bytes(bt, sc):
        # double-buffered input blocks for both streamed arrays
        in_blocks = 2 * bt * (n_sent_ctx + max_n_sent) * sc * dim * itemsize
        # f32 seq-sum accumulators (single-buffered scratch)
        scratch = bt * (n_sent_ctx + max_n_sent) * dim * 4
        # finalize temporaries: f32 + bf16 copies of e/eb/cont/ctx plus the
        # small attention matrices, with headroom
        final_tmp = (6 * bt * (n_sent_ctx + max_n_sent) * dim * 4
                     + 4 * bt * (n_sent_ctx + max_n_sent) * max(poly_m, 8) * 4)
        # poly + output double buffers
        small = 2 * (poly_m * dim * 4 + bt * max_n_sent * 4)
        return in_blocks + scratch + final_tmp + small

    # --- tile selection (no padding: divisors only) --------------------------
    b_divs = _divisors_desc(bs)
    if v7x and bs >= 2:
        # Prefer >= 2 batch tiles so both v7x TensorCores get work; the
        # full-batch tile is kept only as a last resort.
        b_pref = [d for d in b_divs if d < bs] + [bs]
    else:
        b_pref = b_divs
    s_cands = _seq_chunks_desc(seq_len)

    chosen = None
    # Prefer whole-seq blocks at the largest batch tile that fits.
    for bt in b_pref:
        if step_bytes(bt, seq_len) <= vmem_budget:
            chosen = (bt, seq_len)
            break
    if chosen is None:
        for bt in b_pref:
            for sc in s_cands:
                if step_bytes(bt, sc) <= vmem_budget:
                    chosen = (bt, sc)
                    break
            if chosen is not None:
                break
    if chosen is None:
        # TODO(synk): masked partial seq chunks for seq_len values with no
        # multiple-of-8 divisor that fits VMEM; fall back to smallest legal tile.
        chosen = (1, s_cands[-1])
    b_tile, s_chunk = chosen

    n_btiles = bs // b_tile
    grid = (n_btiles, seq_len // s_chunk)

    if v7x and n_btiles >= 2 and hasattr(pltpu, "CORE_PARALLEL"):
        dim_sem = (pltpu.CORE_PARALLEL, pltpu.ARBITRARY)
    else:
        dim_sem = ("parallel", "arbitrary")

    kernel = functools.partial(poly_encoder_kernel,
                               inv_seq_len=1.0 / float(seq_len))

    cost = pl.CostEstimate(
        flops=int(bs * ((n_sent_ctx + max_n_sent) * seq_len * dim      # pooling
                        + 4 * poly_m * n_sent_ctx * dim                # attn 1
                        + 4 * max_n_sent * poly_m * dim                # attn 2
                        + 2 * max_n_sent * dim)),                      # final dot
        transcendentals=int(bs * (poly_m * n_sent_ctx + max_n_sent * poly_m)),
        bytes_accessed=int(emb.size * itemsize + emb_b.size * itemsize
                           + poly_weight.size
                           * jnp.dtype(poly_weight.dtype).itemsize
                           + bs * max_n_sent * 4),
    )

    out = pl.pallas_call(
        kernel,
        out_shape=jax.ShapeDtypeStruct((n_btiles, b_tile, max_n_sent),
                                       jnp.float32),
        grid_spec=pltpu.PrefetchScalarGridSpec(
            num_scalar_prefetch=0,
            grid=grid,
            in_specs=[
                pl.BlockSpec((b_tile, n_sent_ctx, s_chunk, dim),
                             lambda b, s: (b, 0, s, 0)),
                pl.BlockSpec((b_tile, max_n_sent, s_chunk, dim),
                             lambda b, s: (b, 0, s, 0)),
                pl.BlockSpec((poly_m, dim), lambda b, s: (0, 0)),
            ],
            out_specs=pl.BlockSpec((1, b_tile, max_n_sent),
                                   lambda b, s: (b, 0, 0)),
            scratch_shapes=[
                pltpu.VMEM((b_tile, n_sent_ctx, dim), jnp.float32),
                pltpu.VMEM((b_tile, max_n_sent, dim), jnp.float32),
            ],
        ),
        compiler_params=pltpu.CompilerParams(
            dimension_semantics=dim_sem,
            vmem_limit_bytes=vmem_limit,
        ),
        cost_estimate=cost,
    )(emb, emb_b, poly_weight)

    # Contiguous reshape of the tiny output slab back to [batch, max_n_sent].
    return out.reshape(bs, max_n_sent)


# --------------------------------------------------------------------------
# Pure-JAX reference (f32) of the PyTorch forward with labels=None
# --------------------------------------------------------------------------
def reference_forward(emb, emb_b, poly_weight):
    e = jnp.mean(emb.astype(jnp.float32), axis=2)        # [B, L, D]
    eb = jnp.mean(emb_b.astype(jnp.float32), axis=2)     # [B, S, D]
    aw = jax.nn.softmax(jnp.einsum("pd,bld->bpl",
                                   poly_weight.astype(jnp.float32), e), axis=-1)
    cont = jnp.einsum("bpl,bld->bpd", aw, e)
    aw2 = jax.nn.softmax(jnp.einsum("bsd,bpd->bsp", eb, cont), axis=-1)
    ctx = jnp.einsum("bsp,bpd->bsd", aw2, cont)
    return jnp.sum(ctx * eb, axis=-1)


if __name__ == "__main__":
    POLY_M, EMB_SIZE, MAX_N_SENT = 16, 32, 8   # module hyper-params
    N_SENT_CTX, SEQ_LEN, BATCH = 8, 8, 4       # input sizes

    key = jax.random.PRNGKey(0)
    k1, k2, k3 = jax.random.split(key, 3)
    emb = jax.random.normal(k1, (BATCH, N_SENT_CTX, SEQ_LEN, EMB_SIZE), jnp.float32)
    emb_b = jax.random.normal(k2, (BATCH, MAX_N_SENT, SEQ_LEN, EMB_SIZE), jnp.float32)
    # nn.Embedding(poly_m, emb_size) weight, init.normal_(w, emb_size**-0.5)
    # (positional arg is the *mean*, std=1.0)
    poly_weight = (jax.random.normal(k3, (POLY_M, EMB_SIZE), jnp.float32)
                   + EMB_SIZE ** (-0.5))

    out = poly_encoder_forward(emb, emb_b, poly_weight)
    jax.block_until_ready(out)

    ref = reference_forward(emb, emb_b, poly_weight)
    assert out.shape == (BATCH, MAX_N_SENT)
    # Remaining delta vs. the f32 reference comes from bf16 matmul operands
    # (f32 accumulation) in the finalize step.
    assert jnp.allclose(out, ref, atol=2e-2, rtol=2e-2), (
        float(jnp.max(jnp.abs(out - ref))))
    print("KERNEL_OK")
</pallas_src>

<mosaic_0001>
module attributes {stable_mosaic.version = 11 : i64} {
  func.func @poly_encoder_kernel(%arg0: i32, %arg1: i32, %arg2: memref<4x8x8x32xf32, #tpu.memory_space<vmem>>, %arg3: memref<4x8x8x32xf32, #tpu.memory_space<vmem>>, %arg4: memref<16x32xf32, #tpu.memory_space<vmem>>, %arg5: memref<1x4x8xf32, #tpu.memory_space<vmem>>, %arg6: memref<4x8x32xf32, #tpu.memory_space<vmem>>, %arg7: memref<4x8x32xf32, #tpu.memory_space<vmem>>) attributes {dimension_semantics = [#tpu.dimension_semantics<parallel>, #tpu.dimension_semantics<arbitrary>], iteration_bounds = array<i64: 1, 1>, scalar_prefetch = 0 : i64, scratch_operands = 2 : i64, tpu.core_type = #tpu.core_type<tc>, window_params = [{transform_indices = @transform_0, window_bounds = array<i64: 4, 8, 8, 32>}, {transform_indices = @transform_1, window_bounds = array<i64: 4, 8, 8, 32>}, {pipeline_mode = #tpu.pipeline_mode<synchronous>, transform_indices = @transform_2, window_bounds = array<i64: 16, 32>}, {transform_indices = @transform_3, window_bounds = array<i64: 1, 4, 8>}]} {
    %c0_i32 = arith.constant 0 : i32
    %0 = arith.cmpi eq, %arg1, %c0_i32 : i32
    %1 = arith.extui %0 : i1 to i32
    %c0_i32_0 = arith.constant 0 : i32
    %2 = arith.cmpi ne, %1, %c0_i32_0 : i32
    scf.if %2 {
      %cst_23 = arith.constant 0.000000e+00 : f32
      %16 = vector.broadcast %cst_23 : f32 to vector<4x8x32xf32>
      %c0_24 = arith.constant 0 : index
      %c0_25 = arith.constant 0 : index
      %c0_26 = arith.constant 0 : index
      %17 = vector.load %arg6[%c0_24, %c0_25, %c0_26] : memref<4x8x32xf32, #tpu.memory_space<vmem>>, vector<4x8x32xf32>
      tpu.vector_store %arg6[%c0_24, %c0_25, %c0_26], %16 {strides = array<i32>} : memref<4x8x32xf32, #tpu.memory_space<vmem>>, vector<4x8x32xf32>,
      %cst_27 = arith.constant 0.000000e+00 : f32
      %18 = vector.broadcast %cst_27 : f32 to vector<4x8x32xf32>
      %c0_28 = arith.constant 0 : index
      %c0_29 = arith.constant 0 : index
      %c0_30 = arith.constant 0 : index
      %19 = vector.load %arg7[%c0_28, %c0_29, %c0_30] : memref<4x8x32xf32, #tpu.memory_space<vmem>>, vector<4x8x32xf32>
      tpu.vector_store %arg7[%c0_28, %c0_29, %c0_30], %18 {strides = array<i32>} : memref<4x8x32xf32, #tpu.memory_space<vmem>>, vector<4x8x32xf32>,
    } else {
    }
    %c0 = arith.constant 0 : index
    %c0_1 = arith.constant 0 : index
    %c0_2 = arith.constant 0 : index
    %3 = vector.load %arg6[%c0, %c0_1, %c0_2] : memref<4x8x32xf32, #tpu.memory_space<vmem>>, vector<4x8x32xf32>
    %c0_3 = arith.constant 0 : index
    %c0_4 = arith.constant 0 : index
    %c0_5 = arith.constant 0 : index
    %c0_6 = arith.constant 0 : index
    %4 = vector.load %arg2[%c0_3, %c0_4, %c0_5, %c0_6] : memref<4x8x8x32xf32, #tpu.memory_space<vmem>>, vector<4x8x8x32xf32>
    %cst = arith.constant dense<0.000000e+00> : vector<4x8x32xf32>
    %5 = vector.multi_reduction <add>, %4, %cst [2] : vector<4x8x8x32xf32> to vector<4x8x32xf32>
    %6 = arith.addf %3, %5 : vector<4x8x32xf32>
    %c0_7 = arith.constant 0 : index
    %c0_8 = arith.constant 0 : index
    %c0_9 = arith.constant 0 : index
    %7 = vector.load %arg6[%c0_7, %c0_8, %c0_9] : memref<4x8x32xf32, #tpu.memory_space<vmem>>, vector<4x8x32xf32>
    tpu.vector_store %arg6[%c0_7, %c0_8, %c0_9], %6 {strides = array<i32>} : memref<4x8x32xf32, #tpu.memory_space<vmem>>, vector<4x8x32xf32>,
    %c0_10 = arith.constant 0 : index
    %c0_11 = arith.constant 0 : index
    %c0_12 = arith.constant 0 : index
    %8 = vector.load %arg7[%c0_10, %c0_11, %c0_12] : memref<4x8x32xf32, #tpu.memory_space<vmem>>, vector<4x8x32xf32>
    %c0_13 = arith.constant 0 : index
    %c0_14 = arith.constant 0 : index
    %c0_15 = arith.constant 0 : index
    %c0_16 = arith.constant 0 : index
    %9 = vector.load %arg3[%c0_13, %c0_14, %c0_15, %c0_16] : memref<4x8x8x32xf32, #tpu.memory_space<vmem>>, vector<4x8x8x32xf32>
    %cst_17 = arith.constant dense<0.000000e+00> : vector<4x8x32xf32>
    %10 = vector.multi_reduction <add>, %9, %cst_17 [2] : vector<4x8x8x32xf32> to vector<4x8x32xf32>
    %11 = arith.addf %8, %10 : vector<4x8x32xf32>
    %c0_18 = arith.constant 0 : index
    %c0_19 = arith.constant 0 : index
    %c0_20 = arith.constant 0 : index
    %12 = vector.load %arg7[%c0_18, %c0_19, %c0_20] : memref<4x8x32xf32, #tpu.memory_space<vmem>>, vector<4x8x32xf32>
    tpu.vector_store %arg7[%c0_18, %c0_19, %c0_20], %11 {strides = array<i32>} : memref<4x8x32xf32, #tpu.memory_space<vmem>>, vector<4x8x32xf32>,
    %c0_i32_21 = arith.constant 0 : i32
    %13 = arith.cmpi eq, %arg1, %c0_i32_21 : i32
    %14 = arith.extui %13 : i1 to i32
    %c0_i32_22 = arith.constant 0 : i32
    %15 = arith.cmpi ne, %14, %c0_i32_22 : i32
    scf.if %15 {
      %c0_23 = arith.constant 0 : index
      %c0_24 = arith.constant 0 : index
      %c0_25 = arith.constant 0 : index
      %16 = vector.load %arg6[%c0_23, %c0_24, %c0_25] : memref<4x8x32xf32, #tpu.memory_space<vmem>>, vector<4x8x32xf32>
      %cst_26 = arith.constant 1.250000e-01 : f32
      %17 = vector.broadcast %cst_26 : f32 to vector<4x8x32xf32>
      %18 = arith.mulf %16, %17 : vector<4x8x32xf32>
      %c0_27 = arith.constant 0 : index
      %c0_28 = arith.constant 0 : index
      %c0_29 = arith.constant 0 : index
      %19 = vector.load %arg7[%c0_27, %c0_28, %c0_29] : memref<4x8x32xf32, #tpu.memory_space<vmem>>, vector<4x8x32xf32>
      %cst_30 = arith.constant 1.250000e-01 : f32
      %20 = vector.broadcast %cst_30 : f32 to vector<4x8x32xf32>
      %21 = arith.mulf %19, %20 : vector<4x8x32xf32>
      %22 = arith.truncf %18 : vector<4x8x32xf32> to vector<4x8x32xbf16>
      %23 = arith.truncf %21 : vector<4x8x32xf32> to vector<4x8x32xbf16>
      %c0_31 = arith.constant 0 : index
      %c0_32 = arith.constant 0 : index
      %24 = vector.load %arg4[%c0_31, %c0_32] : memref<16x32xf32, #tpu.memory_space<vmem>>, vector<16x32xf32>
      %25 = arith.truncf %24 : vector<16x32xf32> to vector<16x32xbf16>
      %26 = vector.shape_cast %22 : vector<4x8x32xbf16> to vector<32x32xbf16>
      %27 = tpu.transpose %25, [1, 0] : vector<16x32xbf16> -> vector<32x16xbf16>
      %cst_33 = arith.constant dense<0.000000e+00> : vector<32x16xf32>
      %28 = tpu.matmul %26, %27, %cst_33 {dimension_numbers = #tpu.dot_dimension_numbers<[1], [0], [0], [1], [0, 0, 1, 1], [], []>} : vector<32x32xbf16>, vector<32x16xbf16>, vector<32x16xf32> -> vector<32x16xf32>
      %29 = vector.shape_cast %28 : vector<32x16xf32> to vector<4x8x16xf32>
      %cst_34 = arith.constant dense<0xFF800000> : vector<4x16xf32>
      %30 = vector.multi_reduction <maximumf>, %29, %cst_34 [1] : vector<4x8x16xf32> to vector<4x16xf32>
      %31 = vector.shape_cast %30 : vector<4x16xf32> to vector<4x1x16xf32>
      %32 = vector.broadcast %31 : vector<4x1x16xf32> to vector<4x8x16xf32>
      %33 = arith.subf %29, %32 : vector<4x8x16xf32>
      %34 = math.exp %33 : vector<4x8x16xf32>
      %cst_35 = arith.constant dense<0.000000e+00> : vector<4x16xf32>
      %35 = vector.multi_reduction <add>, %34, %cst_35 [1] : vector<4x8x16xf32> to vector<4x16xf32>
      %36 = vector.shape_cast %35 : vector<4x16xf32> to vector<4x1x16xf32>
      %37 = vector.broadcast %36 : vector<4x1x16xf32> to vector<4x8x16xf32>
      %38 = arith.divf %34, %37 : vector<4x8x16xf32>
      %39 = arith.truncf %38 : vector<4x8x16xf32> to vector<4x8x16xbf16>
      "tpu.trace_start"() <{level = 10 : i32, message = "blp,bld->bpd"}> : () -> ()
      %cst_36 = arith.constant dense<0.000000e+00> : vector<4x16x32xf32>
      %40 = tpu.matmul %39, %22, %cst_36 {dimension_numbers = #tpu.dot_dimension_numbers<[1], [1], [2], [2], [0, 0, 0, 2, 1, 2], [0], [0]>} : vector<4x8x16xbf16>, vector<4x8x32xbf16>, vector<4x16x32xf32> -> vector<4x16x32xf32>
      "tpu.trace_stop"() : () -> ()
      %41 = arith.truncf %40 : vector<4x16x32xf32> to vector<4x16x32xbf16>
      "tpu.trace_start"() <{level = 10 : i32, message = "bsd,bpd->bsp"}> : () -> ()
      %cst_37 = arith.constant dense<0.000000e+00> : vector<4x8x16xf32>
      %42 = tpu.matmul %23, %41, %cst_37 {dimension_numbers = #tpu.dot_dimension_numbers<[2], [2], [1], [1], [0, 0, 0, 1, 1, 1], [0], [0]>} : vector<4x8x32xbf16>, vector<4x16x32xbf16>, vector<4x8x16xf32> -> vector<4x8x16xf32>
      "tpu.trace_stop"() : () -> ()
      %cst_38 = arith.constant dense<0xFF800000> : vector<4x8xf32>
      %43 = vector.multi_reduction <maximumf>, %42, %cst_38 [2] : vector<4x8x16xf32> to vector<4x8xf32>
      %44 = vector.shape_cast %43 : vector<4x8xf32> to vector<4x8x1xf32>
      %45 = vector.broadcast %44 : vector<4x8x1xf32> to vector<4x8x16xf32>
      %46 = arith.subf %42, %45 : vector<4x8x16xf32>
      %47 = math.exp %46 : vector<4x8x16xf32>
      %cst_39 = arith.constant dense<0.000000e+00> : vector<4x8xf32>
      %48 = vector.multi_reduction <add>, %47, %cst_39 [2] : vector<4x8x16xf32> to vector<4x8xf32>
      %49 = vector.shape_cast %48 : vector<4x8xf32> to vector<4x8x1xf32>
      %50 = vector.broadcast %49 : vector<4x8x1xf32> to vector<4x8x16xf32>
      %51 = arith.divf %47, %50 : vector<4x8x16xf32>
      %52 = arith.truncf %51 : vector<4x8x16xf32> to vector<4x8x16xbf16>
      "tpu.trace_start"() <{level = 10 : i32, message = "bsp,bpd->bsd"}> : () -> ()
      %cst_40 = arith.constant dense<0.000000e+00> : vector<4x8x32xf32>
      %53 = tpu.matmul %52, %41, %cst_40 {dimension_numbers = #tpu.dot_dimension_numbers<[2], [1], [1], [2], [0, 0, 0, 1, 1, 2], [0], [0]>} : vector<4x8x16xbf16>, vector<4x16x32xbf16>, vector<4x8x32xf32> -> vector<4x8x32xf32>
      "tpu.trace_stop"() : () -> ()
      %54 = arith.mulf %53, %21 : vector<4x8x32xf32>
      %cst_41 = arith.constant dense<0.000000e+00> : vector<4x8xf32>
      %55 = vector.multi_reduction <add>, %54, %cst_41 [2] : vector<4x8x32xf32> to vector<4x8xf32>
      %56 = vector.shape_cast %55 : vector<4x8xf32> to vector<1x4x8xf32>
      %c0_42 = arith.constant 0 : index
      %c0_43 = arith.constant 0 : index
      %c0_44 = arith.constant 0 : index
      %57 = vector.load %arg5[%c0_42, %c0_43, %c0_44] : memref<1x4x8xf32, #tpu.memory_space<vmem>>, vector<1x4x8xf32>
      tpu.vector_store %arg5[%c0_42, %c0_43, %c0_44], %56 {strides = array<i32>} : memref<1x4x8xf32, #tpu.memory_space<vmem>>, vector<1x4x8xf32>,
    } else {
    }
    return
  }
  func.func @transform_0(%arg0: i32, %arg1: i32) -> (i32, i32, i32, i32) {
    %c0_i32 = arith.constant 0 : i32
    %c0_i32_0 = arith.constant 0 : i32
    %c0_i32_1 = arith.constant 0 : i32
    return %arg0, %c0_i32, %arg1, %c0_i32_0 : i32, i32, i32, i32
  }
  func.func @transform_1(%arg0: i32, %arg1: i32) -> (i32, i32, i32, i32) {
    %c0_i32 = arith.constant 0 : i32
    %c0_i32_0 = arith.constant 0 : i32
    %c0_i32_1 = arith.constant 0 : i32
    return %arg0, %c0_i32, %arg1, %c0_i32_0 : i32, i32, i32, i32
  }
  func.func @transform_2(%arg0: i32, %arg1: i32) -> (i32, i32) {
    %c0_i32 = arith.constant 0 : i32
    %c0_i32_0 = arith.constant 0 : i32
    %c0_i32_1 = arith.constant 0 : i32
    return %c0_i32, %c0_i32_0 : i32, i32
  }
  func.func @transform_3(%arg0: i32, %arg1: i32) -> (i32, i32, i32) {
    %c0_i32 = arith.constant 0 : i32
    %c0_i32_0 = arith.constant 0 : i32
    %c0_i32_1 = arith.constant 0 : i32
    return %arg0, %c0_i32, %c0_i32_0 : i32, i32, i32
  }
}

</mosaic_0001>

<llo_original>
// kernel: tpu_custom_call.1
$region0: #{tpu_custom_call.1}
  #allocation0 [shape = 'u32[]', space=smem, size = 0x4, offset = 0x4, fixed_abs, tag = 'smem constant byte address 0x4 - core index']
  #allocation1 [shape = 'u32[144,128]{1,0:T(1,128)}', space=vmem, size = 0x12000, scoped, tag = 'internal scratch']
  #allocation2 [shape = 'f32[4,8,32]{2,1,0:T(8,128)}', space=vmem, size = 0x4000, scoped, tag = 'scratch operand']
  #allocation3 [shape = 'f32[4,8,32]{2,1,0:T(8,128)}', space=vmem, size = 0x4000, scoped, tag = 'scratch operand']
  %s0 = inlined_call_operand.hbm [shape: f32[4,8,8,32], index: 0, kind: input, shape index: {}]
  %s1 = inlined_call_operand.hbm [shape: f32[4,8,8,32], index: 1, kind: input, shape index: {}]
  %s2 = inlined_call_operand.hbm [shape: f32[16,32], index: 2, kind: input, shape index: {}]
  %s3 = inlined_call_operand.hbm [shape: f32[1,4,8], index: 3, kind: output, shape index: {}]
  %s4 = sld [smem:[#allocation0]]
  $region42: #{tpu_custom_call.1} parent=0
    _
  %s6 = ssub.s32 1, %s4
  %s7 = scalar_select 0, %s6, %s4
  $region1: #{tpu_custom_call.1} parent=0
    #allocation4 [shape = 'u8[131072]{0}', space=vmem, size = 0x20000, scoped, tag = 'input window, operand 0, single buffered']
    #allocation5 [shape = 's32[1]{0}', space=sflag, size = 0x4, scoped, tag = 'scoped memory for tpu_custom_call.1']
    #allocation6 [shape = 's32[1]{0}', space=sflag, size = 0x4, scoped, tag = 'scoped memory for tpu_custom_call.1']
    #allocation7 [shape = 'u8[131072]{0}', space=vmem, size = 0x20000, scoped, tag = 'input window, operand 1, single buffered']
    #allocation8 [shape = 's32[1]{0}', space=sflag, size = 0x4, scoped, tag = 'scoped memory for tpu_custom_call.1']
    #allocation9 [shape = 'u8[8192]{0}', space=vmem, size = 0x2000, scoped, tag = 'input window, operand 2, single buffered']
    #allocation10 [shape = 'u8[2048]{0}', space=vmem, size = 0x800, scoped, tag = 'output window, operand 0, single buffered']
    %8 = vsyncpa [#allocation5], 0
    %9 = vsyncpa [#allocation8], 0
    %10 = vsyncpa [#allocation6], 0
    // Predicated region
    $region2: #{tpu_custom_call.1} parent=1 // pred_check
      _
    $region3: #{tpu_custom_call.1} parent=1 // pred_check_branch
      %12 = sbr.rel (0) target = $region5
    $region4: #{tpu_custom_call.1} parent=1 // pred_region
      %s14 = ssub.s32 4096, 4096
      %15 = vsyncadd [#allocation5], %s14
      %s16 = sshll.u32 [#allocation4], 4
      %s17 = int_to_ptr.vmem [resolvable:$true] %s16
      %22 = dma.hbm_to_vmem [thread:$0]  %s0, 4096, %s17, [#allocation5], 128, 128, 8
    $region5: #{tpu_custom_call.1} parent=1 // pred_fallthru
      _
    // Predicated region
    $region6: #{tpu_custom_call.1} parent=1 // pred_check
      _
    $region7: #{tpu_custom_call.1} parent=1 // pred_check_branch
      %24 = sbr.rel (0) target = $region9
    $region8: #{tpu_custom_call.1} parent=1 // pred_region
      %s26 = ssub.s32 4096, 4096
      %27 = vsyncadd [#allocation8], %s26
      %s28 = sshll.u32 [#allocation7], 4
      %s29 = int_to_ptr.vmem [resolvable:$true] %s28
      %34 = dma.hbm_to_vmem [thread:$0]  %s1, 4096, %s29, [#allocation8], 128, 128, 8
    $region9: #{tpu_custom_call.1} parent=1 // pred_fallthru
      _
    // Predicated region
    $region10: #{tpu_custom_call.1} parent=1 // pred_check
      _
    $region11: #{tpu_custom_call.1} parent=1 // pred_check_branch
      %36 = sbr.rel (0) target = $region13
    $region12: #{tpu_custom_call.1} parent=1 // pred_region
      %s38 = ssub.s32 256, 256
      %39 = vsyncadd [#allocation8], %s38
      %s40 = sshll.u32 [#allocation9], 4
      %s41 = int_to_ptr.vmem [resolvable:$true] %s40
      %46 = dma.hbm_to_vmem [thread:$0]  %s2, 256, %s41, [#allocation8], 128, 128, 8
    $region13: #{tpu_custom_call.1} parent=1 // pred_fallthru
      _
    // Predicated region
    $region14: #{tpu_custom_call.1} parent=1 // pred_check
      _
    $region15: #{tpu_custom_call.1} parent=1 // pred_check_branch
      %48 = sbr.rel (0) target = $region17
    $region16: #{tpu_custom_call.1} parent=1 // pred_region
      %49 = dma.done [#allocation5], 4096
    $region17: #{tpu_custom_call.1} parent=1 // pred_fallthru
      _
    // Predicated region
    $region18: #{tpu_custom_call.1} parent=1 // pred_check
      _
    $region19: #{tpu_custom_call.1} parent=1 // pred_check_branch
      %51 = sbr.rel (0) target = $region21
    $region20: #{tpu_custom_call.1} parent=1 // pred_region
      %52 = dma.done [#allocation8], 4096
    $region21: #{tpu_custom_call.1} parent=1 // pred_fallthru
      _
    // Predicated region
    $region22: #{tpu_custom_call.1} parent=1 // pred_check
      _
    $region23: #{tpu_custom_call.1} parent=1 // pred_check_branch
      %54 = sbr.rel (0) target = $region25
    $region24: #{tpu_custom_call.1} parent=1 // pred_region
      %55 = dma.done [#allocation8], 256
    $region25: #{tpu_custom_call.1} parent=1 // pred_fallthru
      _
    %p57 = scmp.eq.s32.totalorder 0, 0
    // Predicated region
    $region26: #{tpu_custom_call.1} parent=1 // pred_check
      %p58 = pneg %p57
    $region27: #{tpu_custom_call.1} parent=1 // pred_check_branch
      %60 = sbr.rel (%p58) target = $region29
    $region28: #{tpu_custom_call.1} parent=1 // pred_region
      %vm61 = vcmask 261120
      %62 = vst.msk [vmem:[#allocation2] sm:$0xff] %vm61, 0.0
      %63 = vst.msk [vmem:[#allocation2 + $0x8] sm:$0xff] %vm61, 0.0
      %64 = vst.msk [vmem:[#allocation2 + $0x10] sm:$0xff] %vm61, 0.0
      %65 = vst.msk [vmem:[#allocation2 + $0x18] sm:$0xff] %vm61, 0.0
      %66 = vst.msk [vmem:[#allocation3] sm:$0xff] %vm61, 0.0
      %67 = vst.msk [vmem:[#allocation3 + $0x8] sm:$0xff] %vm61, 0.0
      %68 = vst.msk [vmem:[#allocation3 + $0x10] sm:$0xff] %vm61, 0.0
      %69 = vst.msk [vmem:[#allocation3 + $0x18] sm:$0xff] %vm61, 0.0
    $region29: #{tpu_custom_call.1} parent=1 // pred_fallthru
      _
    %v70 = vld [vmem:[#allocation2] sm:$0xff]
    %v71 = vld [vmem:[#allocation2 + $0x8] sm:$0xff]
    %v72 = vld [vmem:[#allocation2 + $0x10] sm:$0xff]
    %v73 = vld [vmem:[#allocation2 + $0x18] sm:$0xff]
    %v74 = vld [vmem:[#allocation4] sm:$0xff]
    %v75 = vld [vmem:[#allocation4 + $0x8] sm:$0xff]
    %v76 = vld [vmem:[#allocation4 + $0x10] sm:$0xff]
    %v77 = vld [vmem:[#allocation4 + $0x18] sm:$0xff]
    %v78 = vld [vmem:[#allocation4 + $0x20] sm:$0xff]
    %v79 = vld [vmem:[#allocation4 + $0x28] sm:$0xff]
    %v80 = vld [vmem:[#allocation4 + $0x30] sm:$0xff]
    %v81 = vld [vmem:[#allocation4 + $0x38] sm:$0xff]
    %v82 = vld [vmem:[#allocation4 + $0x40] sm:$0xff]
    %v83 = vld [vmem:[#allocation4 + $0x48] sm:$0xff]
    %v84 = vld [vmem:[#allocation4 + $0x50] sm:$0xff]
    %v85 = vld [vmem:[#allocation4 + $0x58] sm:$0xff]
    %v86 = vld [vmem:[#allocation4 + $0x60] sm:$0xff]
    %v87 = vld [vmem:[#allocation4 + $0x68] sm:$0xff]
    %v88 = vld [vmem:[#allocation4 + $0x70] sm:$0xff]
    %v89 = vld [vmem:[#allocation4 + $0x78] sm:$0xff]
    %v90 = vld [vmem:[#allocation4 + $0x80] sm:$0xff]
    %v91 = vld [vmem:[#allocation4 + $0x88] sm:$0xff]
    %v92 = vld [vmem:[#allocation4 + $0x90] sm:$0xff]
    %v93 = vld [vmem:[#allocation4 + $0x98] sm:$0xff]
    %v94 = vld [vmem:[#allocation4 + $0xa0] sm:$0xff]
    %v95 = vld [vmem:[#allocation4 + $0xa8] sm:$0xff]
    %v96 = vld [vmem:[#allocation4 + $0xb0] sm:$0xff]
    %v97 = vld [vmem:[#allocation4 + $0xb8] sm:$0xff]
    %v98 = vld [vmem:[#allocation4 + $0xc0] sm:$0xff]
    %v99 = vld [vmem:[#allocation4 + $0xc8] sm:$0xff]
    %v100 = vld [vmem:[#allocation4 + $0xd0] sm:$0xff]
    %v101 = vld [vmem:[#allocation4 + $0xd8] sm:$0xff]
    %v102 = vld [vmem:[#allocation4 + $0xe0] sm:$0xff]
    %v103 = vld [vmem:[#allocation4 + $0xe8] sm:$0xff]
    %v104 = vld [vmem:[#allocation4 + $0xf0] sm:$0xff]
    %v105 = vld [vmem:[#allocation4 + $0xf8] sm:$0xff]
    %vm106 = vcmask 261120
    %v107 = vsel %vm106, %v74, 0.0
    %v108 = vrot.slane %v107, 4
    %v109 = vadd.f32 %v107, %v108
    %v110 = vrot.slane %v109, 2
    %v111 = vadd.f32 %v109, %v110
    %v112 = vrot.slane %v111, 1
    %v113 = vadd.f32 %v111, %v112
    %v114 = vsel %vm106, %v75, 0.0
    %v115 = vrot.slane %v114, 4
    %v116 = vadd.f32 %v114, %v115
    %v117 = vrot.slane %v116, 2
    %v118 = vadd.f32 %v116, %v117
    %v119 = vrot.slane %v118, 1
    %v120 = vadd.f32 %v118, %v119
    %v121 = vsel %vm106, %v76, 0.0
    %v122 = vrot.slane %v121, 4
    %v123 = vadd.f32 %v121, %v122
    %v124 = vrot.slane %v123, 2
    %v125 = vadd.f32 %v123, %v124
    %v126 = vrot.slane %v125, 1
    %v127 = vadd.f32 %v125, %v126
    %v128 = vsel %vm106, %v77, 0.0
    %v129 = vrot.slane %v128, 4
    %v130 = vadd.f32 %v128, %v129
    %v131 = vrot.slane %v130, 2
    %v132 = vadd.f32 %v130, %v131
    %v133 = vrot.slane %v132, 1
    %v134 = vadd.f32 %v132, %v133
    %v135 = vsel %vm106, %v78, 0.0
    %v136 = vrot.slane %v135, 4
    %v137 = vadd.f32 %v135, %v136
    %v138 = vrot.slane %v137, 2
    %v139 = vadd.f32 %v137, %v138
    %v140 = vrot.slane %v139, 1
    %v141 = vadd.f32 %v139, %v140
    %v142 = vsel %vm106, %v79, 0.0
    %v143 = vrot.slane %v142, 4
    %v144 = vadd.f32 %v142, %v143
    %v145 = vrot.slane %v144, 2
    %v146 = vadd.f32 %v144, %v145
    %v147 = vrot.slane %v146, 1
    %v148 = vadd.f32 %v146, %v147
    %v149 = vsel %vm106, %v80, 0.0
    %v150 = vrot.slane %v149, 4
    %v151 = vadd.f32 %v149, %v150
    %v152 = vrot.slane %v151, 2
    %v153 = vadd.f32 %v151, %v152
    %v154 = vrot.slane %v153, 1
    %v155 = vadd.f32 %v153, %v154
    %v156 = vsel %vm106, %v81, 0.0
    %v157 = vrot.slane %v156, 4
    %v158 = vadd.f32 %v156, %v157
    %v159 = vrot.slane %v158, 2
    %v160 = vadd.f32 %v158, %v159
    %v161 = vrot.slane %v160, 1
    %v162 = vadd.f32 %v160, %v161
    %v163 = vsel %vm106, %v82, 0.0
    %v164 = vrot.slane %v163, 4
    %v165 = vadd.f32 %v163, %v164
    %v166 = vrot.slane %v165, 2
    %v167 = vadd.f32 %v165, %v166
    %v168 = vrot.slane %v167, 1
    %v169 = vadd.f32 %v167, %v168
    %v170 = vsel %vm106, %v83, 0.0
    %v171 = vrot.slane %v170, 4
    %v172 = vadd.f32 %v170, %v171
    %v173 = vrot.slane %v172, 2
    %v174 = vadd.f32 %v172, %v173
    %v175 = vrot.slane %v174, 1
    %v176 = vadd.f32 %v174, %v175
    %v177 = vsel %vm106, %v84, 0.0
    %v178 = vrot.slane %v177, 4
    %v179 = vadd.f32 %v177, %v178
    %v180 = vrot.slane %v179, 2
    %v181 = vadd.f32 %v179, %v180
    %v182 = vrot.slane %v181, 1
    %v183 = vadd.f32 %v181, %v182
    %v184 = vsel %vm106, %v85, 0.0
    %v185 = vrot.slane %v184, 4
    %v186 = vadd.f32 %v184, %v185
    %v187 = vrot.slane %v186, 2
    %v188 = vadd.f32 %v186, %v187
    %v189 = vrot.slane %v188, 1
    %v190 = vadd.f32 %v188, %v189
    %v191 = vsel %vm106, %v86, 0.0
    %v192 = vrot.slane %v191, 4
    %v193 = vadd.f32 %v191, %v192
    %v194 = vrot.slane %v193, 2
    %v195 = vadd.f32 %v193, %v194
    %v196 = vrot.slane %v195, 1
    %v197 = vadd.f32 %v195, %v196
    %v198 = vsel %vm106, %v87, 0.0
    %v199 = vrot.slane %v198, 4
    %v200 = vadd.f32 %v198, %v199
    %v201 = vrot.slane %v200, 2
    %v202 = vadd.f32 %v200, %v201
    %v203 = vrot.slane %v202, 1
    %v204 = vadd.f32 %v202, %v203
    %v205 = vsel %vm106, %v88, 0.0
    %v206 = vrot.slane %v205, 4
    %v207 = vadd.f32 %v205, %v206
    %v208 = vrot.slane %v207, 2
    %v209 = vadd.f32 %v207, %v208
    %v210 = vrot.slane %v209, 1
    %v211 = vadd.f32 %v209, %v210
    %v212 = vsel %vm106, %v89, 0.0
    %v213 = vrot.slane %v212, 4
    %v214 = vadd.f32 %v212, %v213
    %v215 = vrot.slane %v214, 2
    %v216 = vadd.f32 %v214, %v215
    %v217 = vrot.slane %v216, 1
    %v218 = vadd.f32 %v216, %v217
    %v219 = vsel %vm106, %v90, 0.0
    %v220 = vrot.slane %v219, 4
    %v221 = vadd.f32 %v219, %v220
    %v222 = vrot.slane %v221, 2
    %v223 = vadd.f32 %v221, %v222
    %v224 = vrot.slane %v223, 1
    %v225 = vadd.f32 %v223, %v224
    %v226 = vsel %vm106, %v91, 0.0
    %v227 = vrot.slane %v226, 4
    %v228 = vadd.f32 %v226, %v227
    %v229 = vrot.slane %v228, 2
    %v230 = vadd.f32 %v228, %v229
    %v231 = vrot.slane %v230, 1
    %v232 = vadd.f32 %v230, %v231
    %v233 = vsel %vm106, %v92, 0.0
    %v234 = vrot.slane %v233, 4
    %v235 = vadd.f32 %v233, %v234
    %v236 = vrot.slane %v235, 2
    %v237 = vadd.f32 %v235, %v236
    %v238 = vrot.slane %v237, 1
    %v239 = vadd.f32 %v237, %v238
    %v240 = vsel %vm106, %v93, 0.0
    %v241 = vrot.slane %v240, 4
    %v242 = vadd.f32 %v240, %v241
    %v243 = vrot.slane %v242, 2
    %v244 = vadd.f32 %v242, %v243
    %v245 = vrot.slane %v244, 1
    %v246 = vadd.f32 %v244, %v245
    %v247 = vsel %vm106, %v94, 0.0
    %v248 = vrot.slane %v247, 4
    %v249 = vadd.f32 %v247, %v248
    %v250 = vrot.slane %v249, 2
    %v251 = vadd.f32 %v249, %v250
    %v252 = vrot.slane %v251, 1
    %v253 = vadd.f32 %v251, %v252
    %v254 = vsel %vm106, %v95, 0.0
    %v255 = vrot.slane %v254, 4
    %v256 = vadd.f32 %v254, %v255
    %v257 = vrot.slane %v256, 2
    %v258 = vadd.f32 %v256, %v257
    %v259 = vrot.slane %v258, 1
    %v260 = vadd.f32 %v258, %v259
    %v261 = vsel %vm106, %v96, 0.0
    %v262 = vrot.slane %v261, 4
    %v263 = vadd.f32 %v261, %v262
    %v264 = vrot.slane %v263, 2
    %v265 = vadd.f32 %v263, %v264
    %v266 = vrot.slane %v265, 1
    %v267 = vadd.f32 %v265, %v266
    %v268 = vsel %vm106, %v97, 0.0
    %v269 = vrot.slane %v268, 4
    %v270 = vadd.f32 %v268, %v269
    %v271 = vrot.slane %v270, 2
    %v272 = vadd.f32 %v270, %v271
    %v273 = vrot.slane %v272, 1
    %v274 = vadd.f32 %v272, %v273
    %v275 = vsel %vm106, %v98, 0.0
    %v276 = vrot.slane %v275, 4
    %v277 = vadd.f32 %v275, %v276
    %v278 = vrot.slane %v277, 2
    %v279 = vadd.f32 %v277, %v278
    %v280 = vrot.slane %v279, 1
    %v281 = vadd.f32 %v279, %v280
    %v282 = vsel %vm106, %v99, 0.0
    %v283 = vrot.slane %v282, 4
    %v284 = vadd.f32 %v282, %v283
    %v285 = vrot.slane %v284, 2
    %v286 = vadd.f32 %v284, %v285
    %v287 = vrot.slane %v286, 1
    %v288 = vadd.f32 %v286, %v287
    %v289 = vsel %vm106, %v100, 0.0
    %v290 = vrot.slane %v289, 4
    %v291 = vadd.f32 %v289, %v290
    %v292 = vrot.slane %v291, 2
    %v293 = vadd.f32 %v291, %v292
    %v294 = vrot.slane %v293, 1
    %v295 = vadd.f32 %v293, %v294
    %v296 = vsel %vm106, %v101, 0.0
    %v297 = vrot.slane %v296, 4
    %v298 = vadd.f32 %v296, %v297
    %v299 = vrot.slane %v298, 2
    %v300 = vadd.f32 %v298, %v299
    %v301 = vrot.slane %v300, 1
    %v302 = vadd.f32 %v300, %v301
    %v303 = vsel %vm106, %v102, 0.0
    %v304 = vrot.slane %v303, 4
    %v305 = vadd.f32 %v303, %v304
    %v306 = vrot.slane %v305, 2
    %v307 = vadd.f32 %v305, %v306
    %v308 = vrot.slane %v307, 1
    %v309 = vadd.f32 %v307, %v308
    %v310 = vsel %vm106, %v103, 0.0
    %v311 = vrot.slane %v310, 4
    %v312 = vadd.f32 %v310, %v311
    %v313 = vrot.slane %v312, 2
    %v314 = vadd.f32 %v312, %v313
    %v315 = vrot.slane %v314, 1
    %v316 = vadd.f32 %v314, %v315
    %v317 = vsel %vm106, %v104, 0.0
    %v318 = vrot.slane %v317, 4
    %v319 = vadd.f32 %v317, %v318
    %v320 = vrot.slane %v319, 2
    %v321 = vadd.f32 %v319, %v320
    %v322 = vrot.slane %v321, 1
    %v323 = vadd.f32 %v321, %v322
    %v324 = vsel %vm106, %v105, 0.0
    %v325 = vrot.slane %v324, 4
    %v326 = vadd.f32 %v324, %v325
    %v327 = vrot.slane %v326, 2
    %v328 = vadd.f32 %v326, %v327
    %v329 = vrot.slane %v328, 1
    %v330 = vadd.f32 %v328, %v329
    %vm363 = vcmask 1041409
    %v364 = vsel %vm363, %v120, %v113
    %vm365 = vcmask 1042434
    %v366 = vsel %vm365, %v127, %v364
    %vm367 = vcmask 1043459
    %v368 = vsel %vm367, %v134, %v366
    %vm369 = vcmask 1044484
    %v370 = vsel %vm369, %v141, %v368
    %vm371 = vcmask 1045509
    %v372 = vsel %vm371, %v148, %v370
    %vm373 = vcmask 1046534
    %v374 = vsel %vm373, %v155, %v372
    %vm375 = vcmask 1047559
    %v376 = vsel %vm375, %v162, %v374
    %v377 = vsel %vm363, %v176, %v169
    %v378 = vsel %vm365, %v183, %v377
    %v379 = vsel %vm367, %v190, %v378
    %v380 = vsel %vm369, %v197, %v379
    %v381 = vsel %vm371, %v204, %v380
    %v382 = vsel %vm373, %v211, %v381
    %v383 = vsel %vm375, %v218, %v382
    %v384 = vsel %vm363, %v232, %v225
    %v385 = vsel %vm365, %v239, %v384
    %v386 = vsel %vm367, %v246, %v385
    %v387 = vsel %vm369, %v253, %v386
    %v388 = vsel %vm371, %v260, %v387
    %v389 = vsel %vm373, %v267, %v388
    %v390 = vsel %vm375, %v274, %v389
    %v391 = vsel %vm363, %v288, %v281
    %v392 = vsel %vm365, %v295, %v391
    %v393 = vsel %vm367, %v302, %v392
    %v394 = vsel %vm369, %v309, %v393
    %v395 = vsel %vm371, %v316, %v394
    %v396 = vsel %vm373, %v323, %v395
    %v397 = vsel %vm375, %v330, %v396
    %v402 = vadd.f32 %v70, %v376
    %v403 = vadd.f32 %v71, %v383
    %v404 = vadd.f32 %v72, %v390
    %v405 = vadd.f32 %v73, %v397
    %406 = vst.msk [vmem:[#allocation2] sm:$0xff] %vm106, %v402
    %407 = vst.msk [vmem:[#allocation2 + $0x8] sm:$0xff] %vm106, %v403
    %408 = vst.msk [vmem:[#allocation2 + $0x10] sm:$0xff] %vm106, %v404
    %409 = vst.msk [vmem:[#allocation2 + $0x18] sm:$0xff] %vm106, %v405
    %v410 = vld [vmem:[#allocation3] sm:$0xff]
    %v411 = vld [vmem:[#allocation3 + $0x8] sm:$0xff]
    %v412 = vld [vmem:[#allocation3 + $0x10] sm:$0xff]
    %v413 = vld [vmem:[#allocation3 + $0x18] sm:$0xff]
    %v414 = vld [vmem:[#allocation7] sm:$0xff]
    %v415 = vld [vmem:[#allocation7 + $0x8] sm:$0xff]
    %v416 = vld [vmem:[#allocation7 + $0x10] sm:$0xff]
    %v417 = vld [vmem:[#allocation7 + $0x18] sm:$0xff]
    %v418 = vld [vmem:[#allocation7 + $0x20] sm:$0xff]
    %v419 = vld [vmem:[#allocation7 + $0x28] sm:$0xff]
    %v420 = vld [vmem:[#allocation7 + $0x30] sm:$0xff]
    %v421 = vld [vmem:[#allocation7 + $0x38] sm:$0xff]
    %v422 = vld [vmem:[#allocation7 + $0x40] sm:$0xff]
    %v423 = vld [vmem:[#allocation7 + $0x48] sm:$0xff]
    %v424 = vld [vmem:[#allocation7 + $0x50] sm:$0xff]
    %v425 = vld [vmem:[#allocation7 + $0x58] sm:$0xff]
    %v426 = vld [vmem:[#allocation7 + $0x60] sm:$0xff]
    %v427 = vld [vmem:[#allocation7 + $0x68] sm:$0xff]
    %v428 = vld [vmem:[#allocation7 + $0x70] sm:$0xff]
    %v429 = vld [vmem:[#allocation7 + $0x78] sm:$0xff]
    %v430 = vld [vmem:[#allocation7 + $0x80] sm:$0xff]
    %v431 = vld [vmem:[#allocation7 + $0x88] sm:$0xff]
    %v432 = vld [vmem:[#allocation7 + $0x90] sm:$0xff]
    %v433 = vld [vmem:[#allocation7 + $0x98] sm:$0xff]
    %v434 = vld [vmem:[#allocation7 + $0xa0] sm:$0xff]
    %v435 = vld [vmem:[#allocation7 + $0xa8] sm:$0xff]
    %v436 = vld [vmem:[#allocation7 + $0xb0] sm:$0xff]
    %v437 = vld [vmem:[#allocation7 + $0xb8] sm:$0xff]
    %v438 = vld [vmem:[#allocation7 + $0xc0] sm:$0xff]
    %v439 = vld [vmem:[#allocation7 + $0xc8] sm:$0xff]
    %v440 = vld [vmem:[#allocation7 + $0xd0] sm:$0xff]
    %v441 = vld [vmem:[#allocation7 + $0xd8] sm:$0xff]
    %v442 = vld [vmem:[#allocation7 + $0xe0] sm:$0xff]
    %v443 = vld [vmem:[#allocation7 + $0xe8] sm:$0xff]
    %v444 = vld [vmem:[#allocation7 + $0xf0] sm:$0xff]
    %v445 = vld [vmem:[#allocation7 + $0xf8] sm:$0xff]
    %v446 = vsel %vm106, %v414, 0.0
    %v447 = vrot.slane %v446, 4
    %v448 = vadd.f32 %v446, %v447
    %v449 = vrot.slane %v448, 2
    %v450 = vadd.f32 %v448, %v449
    %v451 = vrot.slane %v450, 1
    %v452 = vadd.f32 %v450, %v451
    %v453 = vsel %vm106, %v415, 0.0
    %v454 = vrot.slane %v453, 4
    %v455 = vadd.f32 %v453, %v454
    %v456 = vrot.slane %v455, 2
    %v457 = vadd.f32 %v455, %v456
    %v458 = vrot.slane %v457, 1
    %v459 = vadd.f32 %v457, %v458
    %v460 = vsel %vm106, %v416, 0.0
    %v461 = vrot.slane %v460, 4
    %v462 = vadd.f32 %v460, %v461
    %v463 = vrot.slane %v462, 2
    %v464 = vadd.f32 %v462, %v463
    %v465 = vrot.slane %v464, 1
    %v466 = vadd.f32 %v464, %v465
    %v467 = vsel %vm106, %v417, 0.0
    %v468 = vrot.slane %v467, 4
    %v469 = vadd.f32 %v467, %v468
    %v470 = vrot.slane %v469, 2
    %v471 = vadd.f32 %v469, %v470
    %v472 = vrot.slane %v471, 1
    %v473 = vadd.f32 %v471, %v472
    %v474 = vsel %vm106, %v418, 0.0
    %v475 = vrot.slane %v474, 4
    %v476 = vadd.f32 %v474, %v475
    %v477 = vrot.slane %v476, 2
    %v478 = vadd.f32 %v476, %v477
    %v479 = vrot.slane %v478, 1
    %v480 = vadd.f32 %v478, %v479
    %v481 = vsel %vm106, %v419, 0.0
    %v482 = vrot.slane %v481, 4
    %v483 = vadd.f32 %v481, %v482
    %v484 = vrot.slane %v483, 2
    %v485 = vadd.f32 %v483, %v484
    %v486 = vrot.slane %v485, 1
    %v487 = vadd.f32 %v485, %v486
    %v488 = vsel %vm106, %v420, 0.0
    %v489 = vrot.slane %v488, 4
    %v490 = vadd.f32 %v488, %v489
    %v491 = vrot.slane %v490, 2
    %v492 = vadd.f32 %v490, %v491
    %v493 = vrot.slane %v492, 1
    %v494 = vadd.f32 %v492, %v493
    %v495 = vsel %vm106, %v421, 0.0
    %v496 = vrot.slane %v495, 4
    %v497 = vadd.f32 %v495, %v496
    %v498 = vrot.slane %v497, 2
    %v499 = vadd.f32 %v497, %v498
    %v500 = vrot.slane %v499, 1
    %v501 = vadd.f32 %v499, %v500
    %v502 = vsel %vm106, %v422, 0.0
    %v503 = vrot.slane %v502, 4
    %v504 = vadd.f32 %v502, %v503
    %v505 = vrot.slane %v504, 2
    %v506 = vadd.f32 %v504, %v505
    %v507 = vrot.slane %v506, 1
    %v508 = vadd.f32 %v506, %v507
    %v509 = vsel %vm106, %v423, 0.0
    %v510 = vrot.slane %v509, 4
    %v511 = vadd.f32 %v509, %v510
    %v512 = vrot.slane %v511, 2
    %v513 = vadd.f32 %v511, %v512
    %v514 = vrot.slane %v513, 1
    %v515 = vadd.f32 %v513, %v514
    %v516 = vsel %vm106, %v424, 0.0
    %v517 = vrot.slane %v516, 4
    %v518 = vadd.f32 %v516, %v517
    %v519 = vrot.slane %v518, 2
    %v520 = vadd.f32 %v518, %v519
    %v521 = vrot.slane %v520, 1
    %v522 = vadd.f32 %v520, %v521
    %v523 = vsel %vm106, %v425, 0.0
    %v524 = vrot.slane %v523, 4
    %v525 = vadd.f32 %v523, %v524
    %v526 = vrot.slane %v525, 2
    %v527 = vadd.f32 %v525, %v526
    %v528 = vrot.slane %v527, 1
    %v529 = vadd.f32 %v527, %v528
    %v530 = vsel %vm106, %v426, 0.0
    %v531 = vrot.slane %v530, 4
    %v532 = vadd.f32 %v530, %v531
    %v533 = vrot.slane %v532, 2
    %v534 = vadd.f32 %v532, %v533
    %v535 = vrot.slane %v534, 1
    %v536 = vadd.f32 %v534, %v535
    %v537 = vsel %vm106, %v427, 0.0
    %v538 = vrot.slane %v537, 4
    %v539 = vadd.f32 %v537, %v538
    %v540 = vrot.slane %v539, 2
    %v541 = vadd.f32 %v539, %v540
    %v542 = vrot.slane %v541, 1
    %v543 = vadd.f32 %v541, %v542
    %v544 = vsel %vm106, %v428, 0.0
    %v545 = vrot.slane %v544, 4
    %v546 = vadd.f32 %v544, %v545
    %v547 = vrot.slane %v546, 2
    %v548 = vadd.f32 %v546, %v547
    %v549 = vrot.slane %v548, 1
    %v550 = vadd.f32 %v548, %v549
    %v551 = vsel %vm106, %v429, 0.0
    %v552 = vrot.slane %v551, 4
    %v553 = vadd.f32 %v551, %v552
    %v554 = vrot.slane %v553, 2
    %v555 = vadd.f32 %v553, %v554
    %v556 = vrot.slane %v555, 1
    %v557 = vadd.f32 %v555, %v556
    %v558 = vsel %vm106, %v430, 0.0
    %v559 = vrot.slane %v558, 4
    %v560 = vadd.f32 %v558, %v559
    %v561 = vrot.slane %v560, 2
    %v562 = vadd.f32 %v560, %v561
    %v563 = vrot.slane %v562, 1
    %v564 = vadd.f32 %v562, %v563
    %v565 = vsel %vm106, %v431, 0.0
    %v566 = vrot.slane %v565, 4
    %v567 = vadd.f32 %v565, %v566
    %v568 = vrot.slane %v567, 2
    %v569 = vadd.f32 %v567, %v568
    %v570 = vrot.slane %v569, 1
    %v571 = vadd.f32 %v569, %v570
    %v572 = vsel %vm106, %v432, 0.0
    %v573 = vrot.slane %v572, 4
    %v574 = vadd.f32 %v572, %v573
    %v575 = vrot.slane %v574, 2
    %v576 = vadd.f32 %v574, %v575
    %v577 = vrot.slane %v576, 1
    %v578 = vadd.f32 %v576, %v577
    %v579 = vsel %vm106, %v433, 0.0
    %v580 = vrot.slane %v579, 4
    %v581 = vadd.f32 %v579, %v580
    %v582 = vrot.slane %v581, 2
    %v583 = vadd.f32 %v581, %v582
    %v584 = vrot.slane %v583, 1
    %v585 = vadd.f32 %v583, %v584
    %v586 = vsel %vm106, %v434, 0.0
    %v587 = vrot.slane %v586, 4
    %v588 = vadd.f32 %v586, %v587
    %v589 = vrot.slane %v588, 2
    %v590 = vadd.f32 %v588, %v589
    %v591 = vrot.slane %v590, 1
    %v592 = vadd.f32 %v590, %v591
    %v593 = vsel %vm106, %v435, 0.0
    %v594 = vrot.slane %v593, 4
    %v595 = vadd.f32 %v593, %v594
    %v596 = vrot.slane %v595, 2
    %v597 = vadd.f32 %v595, %v596
    %v598 = vrot.slane %v597, 1
    %v599 = vadd.f32 %v597, %v598
    %v600 = vsel %vm106, %v436, 0.0
    %v601 = vrot.slane %v600, 4
    %v602 = vadd.f32 %v600, %v601
    %v603 = vrot.slane %v602, 2
    %v604 = vadd.f32 %v602, %v603
    %v605 = vrot.slane %v604, 1
    %v606 = vadd.f32 %v604, %v605
    %v607 = vsel %vm106, %v437, 0.0
    %v608 = vrot.slane %v607, 4
    %v609 = vadd.f32 %v607, %v608
    %v610 = vrot.slane %v609, 2
    %v611 = vadd.f32 %v609, %v610
    %v612 = vrot.slane %v611, 1
    %v613 = vadd.f32 %v611, %v612
    %v614 = vsel %vm106, %v438, 0.0
    %v615 = vrot.slane %v614, 4
    %v616 = vadd.f32 %v614, %v615
    %v617 = vrot.slane %v616, 2
    %v618 = vadd.f32 %v616, %v617
    %v619 = vrot.slane %v618, 1
    %v620 = vadd.f32 %v618, %v619
    %v621 = vsel %vm106, %v439, 0.0
    %v622 = vrot.slane %v621, 4
    %v623 = vadd.f32 %v621, %v622
    %v624 = vrot.slane %v623, 2
    %v625 = vadd.f32 %v623, %v624
    %v626 = vrot.slane %v625, 1
    %v627 = vadd.f32 %v625, %v626
    %v628 = vsel %vm106, %v440, 0.0
    %v629 = vrot.slane %v628, 4
    %v630 = vadd.f32 %v628, %v629
    %v631 = vrot.slane %v630, 2
    %v632 = vadd.f32 %v630, %v631
    %v633 = vrot.slane %v632, 1
    %v634 = vadd.f32 %v632, %v633
    %v635 = vsel %vm106, %v441, 0.0
    %v636 = vrot.slane %v635, 4
    %v637 = vadd.f32 %v635, %v636
    %v638 = vrot.slane %v637, 2
    %v639 = vadd.f32 %v637, %v638
    %v640 = vrot.slane %v639, 1
    %v641 = vadd.f32 %v639, %v640
    %v642 = vsel %vm106, %v442, 0.0
    %v643 = vrot.slane %v642, 4
    %v644 = vadd.f32 %v642, %v643
    %v645 = vrot.slane %v644, 2
    %v646 = vadd.f32 %v644, %v645
    %v647 = vrot.slane %v646, 1
    %v648 = vadd.f32 %v646, %v647
    %v649 = vsel %vm106, %v443, 0.0
    %v650 = vrot.slane %v649, 4
    %v651 = vadd.f32 %v649, %v650
    %v652 = vrot.slane %v651, 2
    %v653 = vadd.f32 %v651, %v652
    %v654 = vrot.slane %v653, 1
    %v655 = vadd.f32 %v653, %v654
    %v656 = vsel %vm106, %v444, 0.0
    %v657 = vrot.slane %v656, 4
    %v658 = vadd.f32 %v656, %v657
    %v659 = vrot.slane %v658, 2
    %v660 = vadd.f32 %v658, %v659
    %v661 = vrot.slane %v660, 1
    %v662 = vadd.f32 %v660, %v661
    %v663 = vsel %vm106, %v445, 0.0
    %v664 = vrot.slane %v663, 4
    %v665 = vadd.f32 %v663, %v664
    %v666 = vrot.slane %v665, 2
    %v667 = vadd.f32 %v665, %v666
    %v668 = vrot.slane %v667, 1
    %v669 = vadd.f32 %v667, %v668
    %v702 = vsel %vm363, %v459, %v452
    %v703 = vsel %vm365, %v466, %v702
    %v704 = vsel %vm367, %v473, %v703
    %v705 = vsel %vm369, %v480, %v704
    %v706 = vsel %vm371, %v487, %v705
    %v707 = vsel %vm373, %v494, %v706
    %v708 = vsel %vm375, %v501, %v707
    %v709 = vsel %vm363, %v515, %v508
    %v710 = vsel %vm365, %v522, %v709
    %v711 = vsel %vm367, %v529, %v710
    %v712 = vsel %vm369, %v536, %v711
    %v713 = vsel %vm371, %v543, %v712
    %v714 = vsel %vm373, %v550, %v713
    %v715 = vsel %vm375, %v557, %v714
    %v716 = vsel %vm363, %v571, %v564
    %v717 = vsel %vm365, %v578, %v716
    %v718 = vsel %vm367, %v585, %v717
    %v719 = vsel %vm369, %v592, %v718
    %v720 = vsel %vm371, %v599, %v719
    %v721 = vsel %vm373, %v606, %v720
    %v722 = vsel %vm375, %v613, %v721
    %v723 = vsel %vm363, %v627, %v620
    %v724 = vsel %vm365, %v634, %v723
    %v725 = vsel %vm367, %v641, %v724
    %v726 = vsel %vm369, %v648, %v725
    %v727 = vsel %vm371, %v655, %v726
    %v728 = vsel %vm373, %v662, %v727
    %v729 = vsel %vm375, %v669, %v728
    %v734 = vadd.f32 %v410, %v708
    %v735 = vadd.f32 %v411, %v715
    %v736 = vadd.f32 %v412, %v722
    %v737 = vadd.f32 %v413, %v729
    %738 = vst.msk [vmem:[#allocation3] sm:$0xff] %vm106, %v734
    %739 = vst.msk [vmem:[#allocation3 + $0x8] sm:$0xff] %vm106, %v735
    %740 = vst.msk [vmem:[#allocation3 + $0x10] sm:$0xff] %vm106, %v736
    %741 = vst.msk [vmem:[#allocation3 + $0x18] sm:$0xff] %vm106, %v737
    // Predicated region
    $region30: #{tpu_custom_call.1} parent=1 // pred_check
      %p742 = pneg %p57
    $region31: #{tpu_custom_call.1} parent=1 // pred_check_branch
      %744 = sbr.rel (%p742) target = $region33
    $region32: #{tpu_custom_call.1} parent=1 // pred_region
      %v745 = vld [vmem:[#allocation2] sm:$0xff]
      %v746 = vld [vmem:[#allocation2 + $0x8] sm:$0xff]
      %v747 = vld [vmem:[#allocation2 + $0x10] sm:$0xff]
      %v748 = vld [vmem:[#allocation2 + $0x18] sm:$0xff]
      %v749 = vmul.f32 %v745, 0.125
      %v750 = vmul.f32 %v746, 0.125
      %v751 = vmul.f32 %v747, 0.125
      %v752 = vmul.f32 %v748, 0.125
      %v753 = vld [vmem:[#allocation3] sm:$0xff]
      %v754 = vld [vmem:[#allocation3 + $0x8] sm:$0xff]
      %v755 = vld [vmem:[#allocation3 + $0x10] sm:$0xff]
      %v756 = vld [vmem:[#allocation3 + $0x18] sm:$0xff]
      %v757 = vmul.f32 %v753, 0.125
      %v758 = vmul.f32 %v754, 0.125
      %v759 = vmul.f32 %v755, 0.125
      %v760 = vmul.f32 %v756, 0.125
      %v761 = vpack.c.bf16 %v749, %v749
      %v762 = vpack.c.bf16 %v750, %v750
      %v763 = vpack.c.bf16 %v751, %v751
      %v764 = vpack.c.bf16 %v752, %v752
      %v765 = vpack.c.bf16 %v757, %v757
      %v766 = vpack.c.bf16 %v758, %v758
      %v767 = vpack.c.bf16 %v759, %v759
      %v768 = vpack.c.bf16 %v760, %v760
      %v769 = vld [vmem:[#allocation9] sm:$0xff]
      %v770 = vld [vmem:[#allocation9 + $0x8] sm:$0xff]
      %v771 = vpack.c.bf16 %v770, %v769
      %v776 = vunpack.c.l.b16 %v761
      %v777 = vunpack.c.l.b16 %v762
      %v778 = vunpack.c.l.b16 %v763
      %v779 = vunpack.c.l.b16 %v764
      %v780 = vpack.c.b16 %v777, %v776
      %v781 = vpack.c.b16 %v779, %v778
      %v783 = vsel %vm106, %v780, 0
      %v786 = vsel %vm106, %v781, 0
      %v789 = vsel %vm106, %v771, 0
      %791 = vmatprep.subr.bf16.mxu0 0
      %792 = vmatpush1.bf16.xpose.msra.mxu0 0
      %793 = vmatprep.subr.bf16.mxu0 0
      %794 = vmatpush1.bf16.xpose.msra.mxu0 0
      %795 = vmatprep.subr.bf16.mxu0 0
      %796 = vmatpush1.bf16.xpose.msra.mxu0 0
      %797 = vmatprep.subr.bf16.mxu0 0
      %798 = vmatpush1.bf16.xpose.msra.mxu0 0
      %799 = vmatprep.subr.bf16.mxu0 0
      %800 = vmatpush1.bf16.xpose.msra.mxu0 0
      %801 = vmatprep.subr.bf16.mxu0 0
      %802 = vmatpush1.bf16.xpose.msra.mxu0 0
      %803 = vmatprep.subr.bf16.mxu0 0
      %804 = vmatpush1.bf16.xpose.msra.mxu0 0
      %805 = vmatprep.subr.bf16.mxu0 0
      %806 = vmatpush1.bf16.xpose.msra.mxu0 %v789
      %807 = vmatprep.subr.bf16.mxu0 0
      %808 = vmatpush2.bf16.xpose.msra.mxu0 0
      %809 = vmatprep.subr.bf16.mxu0 0
      %810 = vmatpush2.bf16.xpose.msra.mxu0 0
      %811 = vmatprep.subr.bf16.mxu0 0
      %812 = vmatpush2.bf16.xpose.msra.mxu0 0
      %813 = vmatprep.subr.bf16.mxu0 0
      %814 = vmatpush2.bf16.xpose.msra.mxu0 0
      %815 = vmatprep.subr.bf16.mxu0 0
      %816 = vmatpush2.bf16.xpose.msra.mxu0 0
      %817 = vmatprep.subr.bf16.mxu0 0
      %818 = vmatpush2.bf16.xpose.msra.mxu0 0
      %819 = vmatprep.subr.bf16.mxu0 0
      %820 = vmatpush2.bf16.xpose.msra.mxu0 0
      %821 = vmatprep.subr.bf16.mxu0 0
      %822 = vmatpush2.bf16.xpose.msra.mxu0 0
      %823 = vmatprep.mubr.bf16.mxu0 0
      %824 = vmatmul.mubr.bf16.gmra.mxu0 %v783
      %v825 = vpop.f32.mrf.mxu0
      %v826 = vadd.f32 0.0, %v825
      %v827 = vpop.f32.mrf.mxu0
      %v828 = vpop.f32.mrf.mxu0
      %v829 = vadd.f32 0.0, %v828
      %v830 = vpop.f32.mrf.mxu0
      %831 = vmatprep.mubr.bf16.mxu0 0
      %832 = vmatmul.mubr.bf16.gmra.mxu0 %v786
      %v833 = vpop.f32.mrf.mxu0
      %v834 = vadd.f32 0.0, %v833
      %v835 = vpop.f32.mrf.mxu0
      %v836 = vpop.f32.mrf.mxu0
      %v837 = vadd.f32 0.0, %v836
      %v838 = vpop.f32.mrf.mxu0
      %839 = vdwg.mxu0
      %vm840 = vcmask 130048
      %v841 = vsel %vm840, %v826, -inf
      %v842 = vrot.slane %v841, 4
      %v843 = vmax.f32 %v841, %v842
      %v844 = vrot.slane %v843, 2
      %v845 = vmax.f32 %v843, %v844
      %v846 = vrot.slane %v845, 1
      %v847 = vmax.f32 %v845, %v846
      %v848 = vsel %vm840, %v829, -inf
      %v849 = vrot.slane %v848, 4
      %v850 = vmax.f32 %v848, %v849
      %v851 = vrot.slane %v850, 2
      %v852 = vmax.f32 %v850, %v851
      %v853 = vrot.slane %v852, 1
      %v854 = vmax.f32 %v852, %v853
      %v855 = vsel %vm840, %v834, -inf
      %v856 = vrot.slane %v855, 4
      %v857 = vmax.f32 %v855, %v856
      %v858 = vrot.slane %v857, 2
      %v859 = vmax.f32 %v857, %v858
      %v860 = vrot.slane %v859, 1
      %v861 = vmax.f32 %v859, %v860
      %v862 = vsel %vm840, %v837, -inf
      %v863 = vrot.slane %v862, 4
      %v864 = vmax.f32 %v862, %v863
      %v865 = vrot.slane %v864, 2
      %v866 = vmax.f32 %v864, %v865
      %v867 = vrot.slane %v866, 1
      %v868 = vmax.f32 %v866, %v867
      %v869 = vsub.f32 %v826, %v847
      %v870 = vsub.f32 %v829, %v854
      %v871 = vsub.f32 %v834, %v861
      %v872 = vsub.f32 %v837, %v868
      %v873 = vmul.f32 %v869, 1.442695
      %v874 = vpow.pop %v873
      %v875 = vmul.f32 %v870, 1.442695
      %v876 = vpow.pop %v875
      %v877 = vmul.f32 %v871, 1.442695
      %v878 = vpow.pop %v877
      %v879 = vmul.f32 %v872, 1.442695
      %v880 = vpow.pop %v879
      %v881 = vsel %vm840, %v874, 0.0
      %v882 = vrot.slane %v881, 4
      %v883 = vadd.f32 %v881, %v882
      %v884 = vrot.slane %v883, 2
      %v885 = vadd.f32 %v883, %v884
      %v886 = vrot.slane %v885, 1
      %v887 = vadd.f32 %v885, %v886
      %v888 = vsel %vm840, %v876, 0.0
      %v889 = vrot.slane %v888, 4
      %v890 = vadd.f32 %v888, %v889
      %v891 = vrot.slane %v890, 2
      %v892 = vadd.f32 %v890, %v891
      %v893 = vrot.slane %v892, 1
      %v894 = vadd.f32 %v892, %v893
      %v895 = vsel %vm840, %v878, 0.0
      %v896 = vrot.slane %v895, 4
      %v897 = vadd.f32 %v895, %v896
      %v898 = vrot.slane %v897, 2
      %v899 = vadd.f32 %v897, %v898
      %v900 = vrot.slane %v899, 1
      %v901 = vadd.f32 %v899, %v900
      %v902 = vsel %vm840, %v880, 0.0
      %v903 = vrot.slane %v902, 4
      %v904 = vadd.f32 %v902, %v903
      %v905 = vrot.slane %v904, 2
      %v906 = vadd.f32 %v904, %v905
      %v907 = vrot.slane %v906, 1
      %v908 = vadd.f32 %v906, %v907
      %v909 = vrcp.pop %v887
      %v910 = vmul.f32 %v874, %v909
      %v911 = vrcp.pop %v894
      %v912 = vmul.f32 %v876, %v911
      %v913 = vrcp.pop %v901
      %v914 = vmul.f32 %v878, %v913
      %v915 = vrcp.pop %v908
      %v916 = vmul.f32 %v880, %v915
      %v917 = vpack.c.bf16 %v910, %v910
      %v918 = vpack.c.bf16 %v912, %v912
      %v919 = vpack.c.bf16 %v914, %v914
      %v920 = vpack.c.bf16 %v916, %v916
      %921 = vxpose.xlu0.c.b16.start [1/8] %v917, 128
      %922 = vxpose.xlu0.c.b16.cont [2/8] 0, 128
      %923 = vxpose.xlu0.c.b16.cont [3/8] 0, 128
      %924 = vxpose.xlu0.c.b16.cont [4/8] 0, 128
      %925 = vxpose.xlu0.c.b16.cont [5/8] 0, 128
      %926 = vxpose.xlu0.c.b16.cont [6/8] 0, 128
      %927 = vxpose.xlu0.c.b16.cont [7/8] 0, 128
      %928 = vxpose.xlu0.c.b16.end [8/8] 0, 128
      %v929 = vpop.trf.xlu0
      %v930 = vpop.trf.xlu0
      %v931 = vpop.trf.xlu0
      %v932 = vpop.trf.xlu0
      %v933 = vpop.trf.xlu0
      %v934 = vpop.trf.xlu0
      %v935 = vpop.trf.xlu0
      %v936 = vpop.trf.xlu0
      %vm937 = vcmask 64512
      %v939 = vsel %vm937, %v929, 0
      %vm941 = vcmask 1043456
      %v943 = vsel %vm941, %v761, 0
      %945 = vmatprep.subr.bf16.mxu0 0
      %946 = vmatpush1.bf16.msra.mxu0 0
      %947 = vmatprep.subr.bf16.mxu0 0
      %948 = vmatpush1.bf16.msra.mxu0 0
      %949 = vmatprep.subr.bf16.mxu0 0
      %950 = vmatpush1.bf16.msra.mxu0 0
      %951 = vmatprep.subr.bf16.mxu0 0
      %952 = vmatpush1.bf16.msra.mxu0 0
      %953 = vmatprep.subr.bf16.mxu0 0
      %954 = vmatpush1.bf16.msra.mxu0 0
      %955 = vmatprep.subr.bf16.mxu0 0
      %956 = vmatpush1.bf16.msra.mxu0 0
      %957 = vmatprep.subr.bf16.mxu0 0
      %958 = vmatpush1.bf16.msra.mxu0 0
      %959 = vmatprep.subr.bf16.mxu0 0
      %960 = vmatpush1.bf16.msra.mxu0 %v943
      %961 = vmatprep.subr.bf16.mxu0 0
      %962 = vmatpush2.bf16.msra.mxu0 0
      %963 = vmatprep.subr.bf16.mxu0 0
      %964 = vmatpush2.bf16.msra.mxu0 0
      %965 = vmatprep.subr.bf16.mxu0 0
      %966 = vmatpush2.bf16.msra.mxu0 0
      %967 = vmatprep.subr.bf16.mxu0 0
      %968 = vmatpush2.bf16.msra.mxu0 0
      %969 = vmatprep.subr.bf16.mxu0 0
      %970 = vmatpush2.bf16.msra.mxu0 0
      %971 = vmatprep.subr.bf16.mxu0 0
      %972 = vmatpush2.bf16.msra.mxu0 0
      %973 = vmatprep.subr.bf16.mxu0 0
      %974 = vmatpush2.bf16.msra.mxu0 0
      %975 = vmatprep.subr.bf16.mxu0 0
      %976 = vmatpush2.bf16.msra.mxu0 0
      %977 = vmatprep.mubr.bf16.mxu0 0
      %978 = vmatmul.mubr.bf16.gmra.mxu0 %v939
      %v979 = vpop.f32.mrf.mxu0
      %v980 = vadd.f32 0.0, %v979
      %v981 = vpop.f32.mrf.mxu0
      %v982 = vpop.f32.mrf.mxu0
      %v983 = vadd.f32 0.0, %v982
      %v984 = vpop.f32.mrf.mxu0
      %985 = vdwg.mxu0
      %986 = vxpose.xlu0.c.b16.start [1/8] %v918, 128
      %987 = vxpose.xlu0.c.b16.cont [2/8] 0, 128
      %988 = vxpose.xlu0.c.b16.cont [3/8] 0, 128
      %989 = vxpose.xlu0.c.b16.cont [4/8] 0, 128
      %990 = vxpose.xlu0.c.b16.cont [5/8] 0, 128
      %991 = vxpose.xlu0.c.b16.cont [6/8] 0, 128
      %992 = vxpose.xlu0.c.b16.cont [7/8] 0, 128
      %993 = vxpose.xlu0.c.b16.end [8/8] 0, 128
      %v994 = vpop.trf.xlu0
      %v995 = vpop.trf.xlu0
      %v996 = vpop.trf.xlu0
      %v997 = vpop.trf.xlu0
      %v998 = vpop.trf.xlu0
      %v999 = vpop.trf.xlu0
      %v1000 = vpop.trf.xlu0
      %v1001 = vpop.trf.xlu0
      %v1003 = vsel %vm937, %v994, 0
      %v1006 = vsel %vm941, %v762, 0
      %1008 = vmatprep.subr.bf16.mxu0 0
      %1009 = vmatpush1.bf16.msra.mxu0 0
      %1010 = vmatprep.subr.bf16.mxu0 0
      %1011 = vmatpush1.bf16.msra.mxu0 0
      %1012 = vmatprep.subr.bf16.mxu0 0
      %1013 = vmatpush1.bf16.msra.mxu0 0
      %1014 = vmatprep.subr.bf16.mxu0 0
      %1015 = vmatpush1.bf16.msra.mxu0 0
      %1016 = vmatprep.subr.bf16.mxu0 0
      %1017 = vmatpush1.bf16.msra.mxu0 0
      %1018 = vmatprep.subr.bf16.mxu0 0
      %1019 = vmatpush1.bf16.msra.mxu0 0
      %1020 = vmatprep.subr.bf16.mxu0 0
      %1021 = vmatpush1.bf16.msra.mxu0 0
      %1022 = vmatprep.subr.bf16.mxu0 0
      %1023 = vmatpush1.bf16.msra.mxu0 %v1006
      %1024 = vmatprep.subr.bf16.mxu0 0
      %1025 = vmatpush2.bf16.msra.mxu0 0
      %1026 = vmatprep.subr.bf16.mxu0 0
      %1027 = vmatpush2.bf16.msra.mxu0 0
      %1028 = vmatprep.subr.bf16.mxu0 0
      %1029 = vmatpush2.bf16.msra.mxu0 0
      %1030 = vmatprep.subr.bf16.mxu0 0
      %1031 = vmatpush2.bf16.msra.mxu0 0
      %1032 = vmatprep.subr.bf16.mxu0 0
      %1033 = vmatpush2.bf16.msra.mxu0 0
      %1034 = vmatprep.subr.bf16.mxu0 0
      %1035 = vmatpush2.bf16.msra.mxu0 0
      %1036 = vmatprep.subr.bf16.mxu0 0
      %1037 = vmatpush2.bf16.msra.mxu0 0
      %1038 = vmatprep.subr.bf16.mxu0 0
      %1039 = vmatpush2.bf16.msra.mxu0 0
      %1040 = vmatprep.mubr.bf16.mxu0 0
      %1041 = vmatmul.mubr.bf16.gmra.mxu0 %v1003
      %v1042 = vpop.f32.mrf.mxu0
      %v1043 = vadd.f32 0.0, %v1042
      %v1044 = vpop.f32.mrf.mxu0
      %v1045 = vpop.f32.mrf.mxu0
      %v1046 = vadd.f32 0.0, %v1045
      %v1047 = vpop.f32.mrf.mxu0
      %1048 = vdwg.mxu0
      %1049 = vxpose.xlu0.c.b16.start [1/8] %v919, 128
      %1050 = vxpose.xlu0.c.b16.cont [2/8] 0, 128
      %1051 = vxpose.xlu0.c.b16.cont [3/8] 0, 128
      %1052 = vxpose.xlu0.c.b16.cont [4/8] 0, 128
      %1053 = vxpose.xlu0.c.b16.cont [5/8] 0, 128
      %1054 = vxpose.xlu0.c.b16.cont [6/8] 0, 128
      %1055 = vxpose.xlu0.c.b16.cont [7/8] 0, 128
      %1056 = vxpose.xlu0.c.b16.end [8/8] 0, 128
      %v1057 = vpop.trf.xlu0
      %v1058 = vpop.trf.xlu0
      %v1059 = vpop.trf.xlu0
      %v1060 = vpop.trf.xlu0
      %v1061 = vpop.trf.xlu0
      %v1062 = vpop.trf.xlu0
      %v1063 = vpop.trf.xlu0
      %v1064 = vpop.trf.xlu0
      %v1066 = vsel %vm937, %v1057, 0
      %v1069 = vsel %vm941, %v763, 0
      %1071 = vmatprep.subr.bf16.mxu0 0
      %1072 = vmatpush1.bf16.msra.mxu0 0
      %1073 = vmatprep.subr.bf16.mxu0 0
      %1074 = vmatpush1.bf16.msra.mxu0 0
      %1075 = vmatprep.subr.bf16.mxu0 0
      %1076 = vmatpush1.bf16.msra.mxu0 0
      %1077 = vmatprep.subr.bf16.mxu0 0
      %1078 = vmatpush1.bf16.msra.mxu0 0
      %1079 = vmatprep.subr.bf16.mxu0 0
      %1080 = vmatpush1.bf16.msra.mxu0 0
      %1081 = vmatprep.subr.bf16.mxu0 0
      %1082 = vmatpush1.bf16.msra.mxu0 0
      %1083 = vmatprep.subr.bf16.mxu0 0
      %1084 = vmatpush1.bf16.msra.mxu0 0
      %1085 = vmatprep.subr.bf16.mxu0 0
      %1086 = vmatpush1.bf16.msra.mxu0 %v1069
      %1087 = vmatprep.subr.bf16.mxu0 0
      %1088 = vmatpush2.bf16.msra.mxu0 0
      %1089 = vmatprep.subr.bf16.mxu0 0
      %1090 = vmatpush2.bf16.msra.mxu0 0
      %1091 = vmatprep.subr.bf16.mxu0 0
      %1092 = vmatpush2.bf16.msra.mxu0 0
      %1093 = vmatprep.subr.bf16.mxu0 0
      %1094 = vmatpush2.bf16.msra.mxu0 0
      %1095 = vmatprep.subr.bf16.mxu0 0
      %1096 = vmatpush2.bf16.msra.mxu0 0
      %1097 = vmatprep.subr.bf16.mxu0 0
      %1098 = vmatpush2.bf16.msra.mxu0 0
      %1099 = vmatprep.subr.bf16.mxu0 0
      %1100 = vmatpush2.bf16.msra.mxu0 0
      %1101 = vmatprep.subr.bf16.mxu0 0
      %1102 = vmatpush2.bf16.msra.mxu0 0
      %1103 = vmatprep.mubr.bf16.mxu0 0
      %1104 = vmatmul.mubr.bf16.gmra.mxu0 %v1066
      %v1105 = vpop.f32.mrf.mxu0
      %v1106 = vadd.f32 0.0, %v1105
      %v1107 = vpop.f32.mrf.mxu0
      %v1108 = vpop.f32.mrf.mxu0
      %v1109 = vadd.f32 0.0, %v1108
      %v1110 = vpop.f32.mrf.mxu0
      %1111 = vdwg.mxu0
      %1112 = vxpose.xlu0.c.b16.start [1/8] %v920, 128
      %1113 = vxpose.xlu0.c.b16.cont [2/8] 0, 128
      %1114 = vxpose.xlu0.c.b16.cont [3/8] 0, 128
      %1115 = vxpose.xlu0.c.b16.cont [4/8] 0, 128
      %1116 = vxpose.xlu0.c.b16.cont [5/8] 0, 128
      %1117 = vxpose.xlu0.c.b16.cont [6/8] 0, 128
      %1118 = vxpose.xlu0.c.b16.cont [7/8] 0, 128
      %1119 = vxpose.xlu0.c.b16.end [8/8] 0, 128
      %v1120 = vpop.trf.xlu0
      %v1121 = vpop.trf.xlu0
      %v1122 = vpop.trf.xlu0
      %v1123 = vpop.trf.xlu0
      %v1124 = vpop.trf.xlu0
      %v1125 = vpop.trf.xlu0
      %v1126 = vpop.trf.xlu0
      %v1127 = vpop.trf.xlu0
      %v1129 = vsel %vm937, %v1120, 0
      %v1132 = vsel %vm941, %v764, 0
      %1134 = vmatprep.subr.bf16.mxu0 0
      %1135 = vmatpush1.bf16.msra.mxu0 0
      %1136 = vmatprep.subr.bf16.mxu0 0
      %1137 = vmatpush1.bf16.msra.mxu0 0
      %1138 = vmatprep.subr.bf16.mxu0 0
      %1139 = vmatpush1.bf16.msra.mxu0 0
      %1140 = vmatprep.subr.bf16.mxu0 0
      %1141 = vmatpush1.bf16.msra.mxu0 0
      %1142 = vmatprep.subr.bf16.mxu0 0
      %1143 = vmatpush1.bf16.msra.mxu0 0
      %1144 = vmatprep.subr.bf16.mxu0 0
      %1145 = vmatpush1.bf16.msra.mxu0 0
      %1146 = vmatprep.subr.bf16.mxu0 0
      %1147 = vmatpush1.bf16.msra.mxu0 0
      %1148 = vmatprep.subr.bf16.mxu0 0
      %1149 = vmatpush1.bf16.msra.mxu0 %v1132
      %1150 = vmatprep.subr.bf16.mxu0 0
      %1151 = vmatpush2.bf16.msra.mxu0 0
      %1152 = vmatprep.subr.bf16.mxu0 0
      %1153 = vmatpush2.bf16.msra.mxu0 0
      %1154 = vmatprep.subr.bf16.mxu0 0
      %1155 = vmatpush2.bf16.msra.mxu0 0
      %1156 = vmatprep.subr.bf16.mxu0 0
      %1157 = vmatpush2.bf16.msra.mxu0 0
      %1158 = vmatprep.subr.bf16.mxu0 0
      %1159 = vmatpush2.bf16.msra.mxu0 0
      %1160 = vmatprep.subr.bf16.mxu0 0
      %1161 = vmatpush2.bf16.msra.mxu0 0
      %1162 = vmatprep.subr.bf16.mxu0 0
      %1163 = vmatpush2.bf16.msra.mxu0 0
      %1164 = vmatprep.subr.bf16.mxu0 0
      %1165 = vmatpush2.bf16.msra.mxu0 0
      %1166 = vmatprep.mubr.bf16.mxu0 0
      %1167 = vmatmul.mubr.bf16.gmra.mxu0 %v1129
      %v1168 = vpop.f32.mrf.mxu0
      %v1169 = vadd.f32 0.0, %v1168
      %v1170 = vpop.f32.mrf.mxu0
      %v1171 = vpop.f32.mrf.mxu0
      %v1172 = vadd.f32 0.0, %v1171
      %v1173 = vpop.f32.mrf.mxu0
      %1174 = vdwg.mxu0
      %v1175 = vpack.c.bf16 %v983, %v980
      %v1176 = vpack.c.bf16 %v1046, %v1043
      %v1177 = vpack.c.bf16 %v1109, %v1106
      %v1178 = vpack.c.bf16 %v1172, %v1169
      %v1180 = vsel %vm106, %v765, 0
      %v1183 = vsel %vm106, %v1175, 0
      %1185 = vmatprep.subr.bf16.mxu0 0
      %1186 = vmatpush1.bf16.xpose.msra.mxu0 0
      %1187 = vmatprep.subr.bf16.mxu0 0
      %1188 = vmatpush1.bf16.xpose.msra.mxu0 0
      %1189 = vmatprep.subr.bf16.mxu0 0
      %1190 = vmatpush1.bf16.xpose.msra.mxu0 0
      %1191 = vmatprep.subr.bf16.mxu0 0
      %1192 = vmatpush1.bf16.xpose.msra.mxu0 0
      %1193 = vmatprep.subr.bf16.mxu0 0
      %1194 = vmatpush1.bf16.xpose.msra.mxu0 0
      %1195 = vmatprep.subr.bf16.mxu0 0
      %1196 = vmatpush1.bf16.xpose.msra.mxu0 0
      %1197 = vmatprep.subr.bf16.mxu0 0
      %1198 = vmatpush1.bf16.xpose.msra.mxu0 0
      %1199 = vmatprep.subr.bf16.mxu0 0
      %1200 = vmatpush1.bf16.xpose.msra.mxu0 %v1183
      %1201 = vmatprep.subr.bf16.mxu0 0
      %1202 = vmatpush2.bf16.xpose.msra.mxu0 0
      %1203 = vmatprep.subr.bf16.mxu0 0
      %1204 = vmatpush2.bf16.xpose.msra.mxu0 0
      %1205 = vmatprep.subr.bf16.mxu0 0
      %1206 = vmatpush2.bf16.xpose.msra.mxu0 0
      %1207 = vmatprep.subr.bf16.mxu0 0
      %1208 = vmatpush2.bf16.xpose.msra.mxu0 0
      %1209 = vmatprep.subr.bf16.mxu0 0
      %1210 = vmatpush2.bf16.xpose.msra.mxu0 0
      %1211 = vmatprep.subr.bf16.mxu0 0
      %1212 = vmatpush2.bf16.xpose.msra.mxu0 0
      %1213 = vmatprep.subr.bf16.mxu0 0
      %1214 = vmatpush2.bf16.xpose.msra.mxu0 0
      %1215 = vmatprep.subr.bf16.mxu0 0
      %1216 = vmatpush2.bf16.xpose.msra.mxu0 0
      %1217 = vmatprep.mubr.bf16.mxu0 0
      %1218 = vmatmul.mubr.bf16.gmra.mxu0 %v1180
      %v1219 = vpop.f32.mrf.mxu0
      %v1220 = vadd.f32 0.0, %v1219
      %v1221 = vpop.f32.mrf.mxu0
      %v1222 = vpop.f32.mrf.mxu0
      %v1223 = vpop.f32.mrf.mxu0
      %1224 = vdwg.mxu0
      %v1226 = vsel %vm106, %v766, 0
      %v1229 = vsel %vm106, %v1176, 0
      %1231 = vmatprep.subr.bf16.mxu0 0
      %1232 = vmatpush1.bf16.xpose.msra.mxu0 0
      %1233 = vmatprep.subr.bf16.mxu0 0
      %1234 = vmatpush1.bf16.xpose.msra.mxu0 0
      %1235 = vmatprep.subr.bf16.mxu0 0
      %1236 = vmatpush1.bf16.xpose.msra.mxu0 0
      %1237 = vmatprep.subr.bf16.mxu0 0
      %1238 = vmatpush1.bf16.xpose.msra.mxu0 0
      %1239 = vmatprep.subr.bf16.mxu0 0
      %1240 = vmatpush1.bf16.xpose.msra.mxu0 0
      %1241 = vmatprep.subr.bf16.mxu0 0
      %1242 = vmatpush1.bf16.xpose.msra.mxu0 0
      %1243 = vmatprep.subr.bf16.mxu0 0
      %1244 = vmatpush1.bf16.xpose.msra.mxu0 0
      %1245 = vmatprep.subr.bf16.mxu0 0
      %1246 = vmatpush1.bf16.xpose.msra.mxu0 %v1229
      %1247 = vmatprep.subr.bf16.mxu0 0
      %1248 = vmatpush2.bf16.xpose.msra.mxu0 0
      %1249 = vmatprep.subr.bf16.mxu0 0
      %1250 = vmatpush2.bf16.xpose.msra.mxu0 0
      %1251 = vmatprep.subr.bf16.mxu0 0
      %1252 = vmatpush2.bf16.xpose.msra.mxu0 0
      %1253 = vmatprep.subr.bf16.mxu0 0
      %1254 = vmatpush2.bf16.xpose.msra.mxu0 0
      %1255 = vmatprep.subr.bf16.mxu0 0
      %1256 = vmatpush2.bf16.xpose.msra.mxu0 0
      %1257 = vmatprep.subr.bf16.mxu0 0
      %1258 = vmatpush2.bf16.xpose.msra.mxu0 0
      %1259 = vmatprep.subr.bf16.mxu0 0
      %1260 = vmatpush2.bf16.xpose.msra.mxu0 0
      %1261 = vmatprep.subr.bf16.mxu0 0
      %1262 = vmatpush2.bf16.xpose.msra.mxu0 0
      %1263 = vmatprep.mubr.bf16.mxu0 0
      %1264 = vmatmul.mubr.bf16.gmra.mxu0 %v1226
      %v1265 = vpop.f32.mrf.mxu0
      %v1266 = vadd.f32 0.0, %v1265
      %v1267 = vpop.f32.mrf.mxu0
      %v1268 = vpop.f32.mrf.mxu0
      %v1269 = vpop.f32.mrf.mxu0
      %1270 = vdwg.mxu0
      %v1272 = vsel %vm106, %v767, 0
      %v1275 = vsel %vm106, %v1177, 0
      %1277 = vmatprep.subr.bf16.mxu0 0
      %1278 = vmatpush1.bf16.xpose.msra.mxu0 0
      %1279 = vmatprep.subr.bf16.mxu0 0
      %1280 = vmatpush1.bf16.xpose.msra.mxu0 0
      %1281 = vmatprep.subr.bf16.mxu0 0
      %1282 = vmatpush1.bf16.xpose.msra.mxu0 0
      %1283 = vmatprep.subr.bf16.mxu0 0
      %1284 = vmatpush1.bf16.xpose.msra.mxu0 0
      %1285 = vmatprep.subr.bf16.mxu0 0
      %1286 = vmatpush1.bf16.xpose.msra.mxu0 0
      %1287 = vmatprep.subr.bf16.mxu0 0
      %1288 = vmatpush1.bf16.xpose.msra.mxu0 0
      %1289 = vmatprep.subr.bf16.mxu0 0
      %1290 = vmatpush1.bf16.xpose.msra.mxu0 0
      %1291 = vmatprep.subr.bf16.mxu0 0
      %1292 = vmatpush1.bf16.xpose.msra.mxu0 %v1275
      %1293 = vmatprep.subr.bf16.mxu0 0
      %1294 = vmatpush2.bf16.xpose.msra.mxu0 0
      %1295 = vmatprep.subr.bf16.mxu0 0
      %1296 = vmatpush2.bf16.xpose.msra.mxu0 0
      %1297 = vmatprep.subr.bf16.mxu0 0
      %1298 = vmatpush2.bf16.xpose.msra.mxu0 0
      %1299 = vmatprep.subr.bf16.mxu0 0
      %1300 = vmatpush2.bf16.xpose.msra.mxu0 0
      %1301 = vmatprep.subr.bf16.mxu0 0
      %1302 = vmatpush2.bf16.xpose.msra.mxu0 0
      %1303 = vmatprep.subr.bf16.mxu0 0
      %1304 = vmatpush2.bf16.xpose.msra.mxu0 0
      %1305 = vmatprep.subr.bf16.mxu0 0
      %1306 = vmatpush2.bf16.xpose.msra.mxu0 0
      %1307 = vmatprep.subr.bf16.mxu0 0
      %1308 = vmatpush2.bf16.xpose.msra.mxu0 0
      %1309 = vmatprep.mubr.bf16.mxu0 0
      %1310 = vmatmul.mubr.bf16.gmra.mxu0 %v1272
      %v1311 = vpop.f32.mrf.mxu0
      %v1312 = vadd.f32 0.0, %v1311
      %v1313 = vpop.f32.mrf.mxu0
      %v1314 = vpop.f32.mrf.mxu0
      %v1315 = vpop.f32.mrf.mxu0
      %1316 = vdwg.mxu0
      %v1318 = vsel %vm106, %v768, 0
      %v1321 = vsel %vm106, %v1178, 0
      %1323 = vmatprep.subr.bf16.mxu0 0
      %1324 = vmatpush1.bf16.xpose.msra.mxu0 0
      %1325 = vmatprep.subr.bf16.mxu0 0
      %1326 = vmatpush1.bf16.xpose.msra.mxu0 0
      %1327 = vmatprep.subr.bf16.mxu0 0
      %1328 = vmatpush1.bf16.xpose.msra.mxu0 0
      %1329 = vmatprep.subr.bf16.mxu0 0
      %1330 = vmatpush1.bf16.xpose.msra.mxu0 0
      %1331 = vmatprep.subr.bf16.mxu0 0
      %1332 = vmatpush1.bf16.xpose.msra.mxu0 0
      %1333 = vmatprep.subr.bf16.mxu0 0
      %1334 = vmatpush1.bf16.xpose.msra.mxu0 0
      %1335 = vmatprep.subr.bf16.mxu0 0
      %1336 = vmatpush1.bf16.xpose.msra.mxu0 0
      %1337 = vmatprep.subr.bf16.mxu0 0
      %1338 = vmatpush1.bf16.xpose.msra.mxu0 %v1321
      %1339 = vmatprep.subr.bf16.mxu0 0
      %1340 = vmatpush2.bf16.xpose.msra.mxu0 0
      %1341 = vmatprep.subr.bf16.mxu0 0
      %1342 = vmatpush2.bf16.xpose.msra.mxu0 0
      %1343 = vmatprep.subr.bf16.mxu0 0
      %1344 = vmatpush2.bf16.xpose.msra.mxu0 0
      %1345 = vmatprep.subr.bf16.mxu0 0
      %1346 = vmatpush2.bf16.xpose.msra.mxu0 0
      %1347 = vmatprep.subr.bf16.mxu0 0
      %1348 = vmatpush2.bf16.xpose.msra.mxu0 0
      %1349 = vmatprep.subr.bf16.mxu0 0
      %1350 = vmatpush2.bf16.xpose.msra.mxu0 0
      %1351 = vmatprep.subr.bf16.mxu0 0
      %1352 = vmatpush2.bf16.xpose.msra.mxu0 0
      %1353 = vmatprep.subr.bf16.mxu0 0
      %1354 = vmatpush2.bf16.xpose.msra.mxu0 0
      %1355 = vmatprep.mubr.bf16.mxu0 0
      %1356 = vmatmul.mubr.bf16.gmra.mxu0 %v1318
      %v1357 = vpop.f32.mrf.mxu0
      %v1358 = vadd.f32 0.0, %v1357
      %v1359 = vpop.f32.mrf.mxu0
      %v1360 = vpop.f32.mrf.mxu0
      %v1361 = vpop.f32.mrf.mxu0
      %1362 = vdwg.mxu0
      %v1363 = vsel %vm840, %v1220, -inf
      %1364 = vmax.xlane.f32.xlu0 %v1363
      %v1365 = vpop.xlane.xlu0 %1364
      %v1366 = vsel %vm840, %v1266, -inf
      %1367 = vmax.xlane.f32.xlu0 %v1366
      %v1368 = vpop.xlane.xlu0 %1367
      %v1369 = vsel %vm840, %v1312, -inf
      %1370 = vmax.xlane.f32.xlu0 %v1369
      %v1371 = vpop.xlane.xlu0 %1370
      %v1372 = vsel %vm840, %v1358, -inf
      %1373 = vmax.xlane.f32.xlu0 %v1372
      %v1374 = vpop.xlane.xlu0 %1373
      %v1375 = vsub.f32 %v1220, %v1365
      %v1376 = vsub.f32 %v1266, %v1368
      %v1377 = vsub.f32 %v1312, %v1371
      %v1378 = vsub.f32 %v1358, %v1374
      %v1379 = vmul.f32 %v1375, 1.442695
      %v1380 = vpow.pop %v1379
      %v1381 = vmul.f32 %v1376, 1.442695
      %v1382 = vpow.pop %v1381
      %v1383 = vmul.f32 %v1377, 1.442695
      %v1384 = vpow.pop %v1383
      %v1385 = vmul.f32 %v1378, 1.442695
      %v1386 = vpow.pop %v1385
      %v1387 = vsel %vm840, %v1380, 0.0
      %1388 = vadd.xlane.f32.xlu0 %v1387
      %v1389 = vpop.xlane.xlu0 %1388
      %v1390 = vsel %vm840, %v1382, 0.0
      %1391 = vadd.xlane.f32.xlu0 %v1390
      %v1392 = vpop.xlane.xlu0 %1391
      %v1393 = vsel %vm840, %v1384, 0.0
      %1394 = vadd.xlane.f32.xlu0 %v1393
      %v1395 = vpop.xlane.xlu0 %1394
      %v1396 = vsel %vm840, %v1386, 0.0
      %1397 = vadd.xlane.f32.xlu0 %v1396
      %v1398 = vpop.xlane.xlu0 %1397
      %v1399 = vrcp.pop %v1389
      %v1400 = vmul.f32 %v1380, %v1399
      %v1401 = vrcp.pop %v1392
      %v1402 = vmul.f32 %v1382, %v1401
      %v1403 = vrcp.pop %v1395
      %v1404 = vmul.f32 %v1384, %v1403
      %v1405 = vrcp.pop %v1398
      %v1406 = vmul.f32 %v1386, %v1405
      %v1407 = vpack.c.bf16 %v1400, %v1400
      %v1408 = vpack.c.bf16 %v1402, %v1402
      %v1409 = vpack.c.bf16 %v1404, %v1404
      %v1410 = vpack.c.bf16 %v1406, %v1406
      %v1412 = vsel %vm840, %v1407, 0
      %1414 = vmatprep.subr.bf16.mxu0 0
      %1415 = vmatpush1.bf16.msra.mxu0 0
      %1416 = vmatprep.subr.bf16.mxu0 0
      %1417 = vmatpush1.bf16.msra.mxu0 0
      %1418 = vmatprep.subr.bf16.mxu0 0
      %1419 = vmatpush1.bf16.msra.mxu0 0
      %1420 = vmatprep.subr.bf16.mxu0 0
      %1421 = vmatpush1.bf16.msra.mxu0 0
      %1422 = vmatprep.subr.bf16.mxu0 0
      %1423 = vmatpush1.bf16.msra.mxu0 0
      %1424 = vmatprep.subr.bf16.mxu0 0
      %1425 = vmatpush1.bf16.msra.mxu0 0
      %1426 = vmatprep.subr.bf16.mxu0 0
      %1427 = vmatpush1.bf16.msra.mxu0 0
      %1428 = vmatprep.subr.bf16.mxu0 0
      %1429 = vmatpush1.bf16.msra.mxu0 %v1175
      %1430 = vmatprep.subr.bf16.mxu0 0
      %1431 = vmatpush2.bf16.msra.mxu0 0
      %1432 = vmatprep.subr.bf16.mxu0 0
      %1433 = vmatpush2.bf16.msra.mxu0 0
      %1434 = vmatprep.subr.bf16.mxu0 0
      %1435 = vmatpush2.bf16.msra.mxu0 0
      %1436 = vmatprep.subr.bf16.mxu0 0
      %1437 = vmatpush2.bf16.msra.mxu0 0
      %1438 = vmatprep.subr.bf16.mxu0 0
      %1439 = vmatpush2.bf16.msra.mxu0 0
      %1440 = vmatprep.subr.bf16.mxu0 0
      %1441 = vmatpush2.bf16.msra.mxu0 0
      %1442 = vmatprep.subr.bf16.mxu0 0
      %1443 = vmatpush2.bf16.msra.mxu0 0
      %1444 = vmatprep.subr.bf16.mxu0 0
      %1445 = vmatpush2.bf16.msra.mxu0 0
      %1446 = vmatprep.mubr.bf16.mxu0 0
      %1447 = vmatmul.mubr.bf16.gmra.mxu0 %v1412
      %v1448 = vpop.f32.mrf.mxu0
      %v1449 = vadd.f32 0.0, %v1448
      %v1450 = vpop.f32.mrf.mxu0
      %v1451 = vpop.f32.mrf.mxu0
      %v1452 = vpop.f32.mrf.mxu0
      %1453 = vdwg.mxu0
      %v1455 = vsel %vm840, %v1408, 0
      %1457 = vmatprep.subr.bf16.mxu0 0
      %1458 = vmatpush1.bf16.msra.mxu0 0
      %1459 = vmatprep.subr.bf16.mxu0 0
      %1460 = vmatpush1.bf16.msra.mxu0 0
      %1461 = vmatprep.subr.bf16.mxu0 0
      %1462 = vmatpush1.bf16.msra.mxu0 0
      %1463 = vmatprep.subr.bf16.mxu0 0
      %1464 = vmatpush1.bf16.msra.mxu0 0
      %1465 = vmatprep.subr.bf16.mxu0 0
      %1466 = vmatpush1.bf16.msra.mxu0 0
      %1467 = vmatprep.subr.bf16.mxu0 0
      %1468 = vmatpush1.bf16.msra.mxu0 0
      %1469 = vmatprep.subr.bf16.mxu0 0
      %1470 = vmatpush1.bf16.msra.mxu0 0
      %1471 = vmatprep.subr.bf16.mxu0 0
      %1472 = vmatpush1.bf16.msra.mxu0 %v1176
      %1473 = vmatprep.subr.bf16.mxu0 0
      %1474 = vmatpush2.bf16.msra.mxu0 0
      %1475 = vmatprep.subr.bf16.mxu0 0
      %1476 = vmatpush2.bf16.msra.mxu0 0
      %1477 = vmatprep.subr.bf16.mxu0 0
      %1478 = vmatpush2.bf16.msra.mxu0 0
      %1479 = vmatprep.subr.bf16.mxu0 0
      %1480 = vmatpush2.bf16.msra.mxu0 0
      %1481 = vmatprep.subr.bf16.mxu0 0
      %1482 = vmatpush2.bf16.msra.mxu0 0
      %1483 = vmatprep.subr.bf16.mxu0 0
      %1484 = vmatpush2.bf16.msra.mxu0 0
      %1485 = vmatprep.subr.bf16.mxu0 0
      %1486 = vmatpush2.bf16.msra.mxu0 0
      %1487 = vmatprep.subr.bf16.mxu0 0
      %1488 = vmatpush2.bf16.msra.mxu0 0
      %1489 = vmatprep.mubr.bf16.mxu0 0
      %1490 = vmatmul.mubr.bf16.gmra.mxu0 %v1455
      %v1491 = vpop.f32.mrf.mxu0
      %v1492 = vadd.f32 0.0, %v1491
      %v1493 = vpop.f32.mrf.mxu0
      %v1494 = vpop.f32.mrf.mxu0
      %v1495 = vpop.f32.mrf.mxu0
      %1496 = vdwg.mxu0
      %v1498 = vsel %vm840, %v1409, 0
      %1500 = vmatprep.subr.bf16.mxu0 0
      %1501 = vmatpush1.bf16.msra.mxu0 0
      %1502 = vmatprep.subr.bf16.mxu0 0
      %1503 = vmatpush1.bf16.msra.mxu0 0
      %1504 = vmatprep.subr.bf16.mxu0 0
      %1505 = vmatpush1.bf16.msra.mxu0 0
      %1506 = vmatprep.subr.bf16.mxu0 0
      %1507 = vmatpush1.bf16.msra.mxu0 0
      %1508 = vmatprep.subr.bf16.mxu0 0
      %1509 = vmatpush1.bf16.msra.mxu0 0
      %1510 = vmatprep.subr.bf16.mxu0 0
      %1511 = vmatpush1.bf16.msra.mxu0 0
      %1512 = vmatprep.subr.bf16.mxu0 0
      %1513 = vmatpush1.bf16.msra.mxu0 0
      %1514 = vmatprep.subr.bf16.mxu0 0
      %1515 = vmatpush1.bf16.msra.mxu0 %v1177
      %1516 = vmatprep.subr.bf16.mxu0 0
      %1517 = vmatpush2.bf16.msra.mxu0 0
      %1518 = vmatprep.subr.bf16.mxu0 0
      %1519 = vmatpush2.bf16.msra.mxu0 0
      %1520 = vmatprep.subr.bf16.mxu0 0
      %1521 = vmatpush2.bf16.msra.mxu0 0
      %1522 = vmatprep.subr.bf16.mxu0 0
      %1523 = vmatpush2.bf16.msra.mxu0 0
      %1524 = vmatprep.subr.bf16.mxu0 0
      %1525 = vmatpush2.bf16.msra.mxu0 0
      %1526 = vmatprep.subr.bf16.mxu0 0
      %1527 = vmatpush2.bf16.msra.mxu0 0
      %1528 = vmatprep.subr.bf16.mxu0 0
      %1529 = vmatpush2.bf16.msra.mxu0 0
      %1530 = vmatprep.subr.bf16.mxu0 0
      %1531 = vmatpush2.bf16.msra.mxu0 0
      %1532 = vmatprep.mubr.bf16.mxu0 0
      %1533 = vmatmul.mubr.bf16.gmra.mxu0 %v1498
      %v1534 = vpop.f32.mrf.mxu0
      %v1535 = vadd.f32 0.0, %v1534
      %v1536 = vpop.f32.mrf.mxu0
      %v1537 = vpop.f32.mrf.mxu0
      %v1538 = vpop.f32.mrf.mxu0
      %1539 = vdwg.mxu0
      %v1541 = vsel %vm840, %v1410, 0
      %1543 = vmatprep.subr.bf16.mxu0 0
      %1544 = vmatpush1.bf16.msra.mxu0 0
      %1545 = vmatprep.subr.bf16.mxu0 0
      %1546 = vmatpush1.bf16.msra.mxu0 0
      %1547 = vmatprep.subr.bf16.mxu0 0
      %1548 = vmatpush1.bf16.msra.mxu0 0
      %1549 = vmatprep.subr.bf16.mxu0 0
      %1550 = vmatpush1.bf16.msra.mxu0 0
      %1551 = vmatprep.subr.bf16.mxu0 0
      %1552 = vmatpush1.bf16.msra.mxu0 0
      %1553 = vmatprep.subr.bf16.mxu0 0
      %1554 = vmatpush1.bf16.msra.mxu0 0
      %1555 = vmatprep.subr.bf16.mxu0 0
      %1556 = vmatpush1.bf16.msra.mxu0 0
      %1557 = vmatprep.subr.bf16.mxu0 0
      %1558 = vmatpush1.bf16.msra.mxu0 %v1178
      %1559 = vmatprep.subr.bf16.mxu0 0
      %1560 = vmatpush2.bf16.msra.mxu0 0
      %1561 = vmatprep.subr.bf16.mxu0 0
      %1562 = vmatpush2.bf16.msra.mxu0 0
      %1563 = vmatprep.subr.bf16.mxu0 0
      %1564 = vmatpush2.bf16.msra.mxu0 0
      %1565 = vmatprep.subr.bf16.mxu0 0
      %1566 = vmatpush2.bf16.msra.mxu0 0
      %1567 = vmatprep.subr.bf16.mxu0 0
      %1568 = vmatpush2.bf16.msra.mxu0 0
      %1569 = vmatprep.subr.bf16.mxu0 0
      %1570 = vmatpush2.bf16.msra.mxu0 0
      %1571 = vmatprep.subr.bf16.mxu0 0
      %1572 = vmatpush2.bf16.msra.mxu0 0
      %1573 = vmatprep.subr.bf16.mxu0 0
      %1574 = vmatpush2.bf16.msra.mxu0 0
      %1575 = vmatprep.mubr.bf16.mxu0 0
      %1576 = vmatmul.mubr.bf16.gmra.mxu0 %v1541
      %v1577 = vpop.f32.mrf.mxu0
      %v1578 = vadd.f32 0.0, %v1577
      %v1579 = vpop.f32.mrf.mxu0
      %v1580 = vpop.f32.mrf.mxu0
      %v1581 = vpop.f32.mrf.mxu0
      %1582 = vdwg.mxu0
      %v1583 = vmul.f32 %v1449, %v757
      %v1584 = vmul.f32 %v1492, %v758
      %v1585 = vmul.f32 %v1535, %v759
      %v1586 = vmul.f32 %v1578, %v760
      %v1587 = vsel %vm106, %v1583, 0.0
      %1588 = vadd.xlane.f32.xlu0 %v1587
      %v1589 = vpop.xlane.xlu0 %1588
      %v1590 = vsel %vm106, %v1584, 0.0
      %1591 = vadd.xlane.f32.xlu0 %v1590
      %v1592 = vpop.xlane.xlu0 %1591
      %v1593 = vsel %vm106, %v1585, 0.0
      %1594 = vadd.xlane.f32.xlu0 %v1593
      %v1595 = vpop.xlane.xlu0 %1594
      %v1596 = vsel %vm106, %v1586, 0.0
      %1597 = vadd.xlane.f32.xlu0 %v1596
      %v1598 = vpop.xlane.xlu0 %1597
      %v1603 = vlaneseq
      %v1604 = vand.u32 %v1603, 127
      %v1605 = vlaneseq
      %v1606 = vshrl.u32 %v1605, 7
      %v1607 = vsub.s32 %v1604, %v1606
      %v1608 = vrot.slane %v1589, %v1607
      %v1609 = vlaneseq
      %v1610 = vshrl.u32 %v1609, 7
      %v1611 = vsub.s32 %v1604, %v1610
      %v1612 = vrot.slane %v1592, %v1611
      %v1613 = vlaneseq
      %v1614 = vshrl.u32 %v1613, 7
      %v1615 = vsub.s32 %v1604, %v1614
      %v1616 = vrot.slane %v1595, %v1615
      %v1617 = vlaneseq
      %v1618 = vshrl.u32 %v1617, 7
      %v1619 = vsub.s32 %v1604, %v1618
      %v1620 = vrot.slane %v1598, %v1619
      %v1621 = vsel %vm363, %v1612, %v1608
      %v1622 = vsel %vm365, %v1616, %v1621
      %v1623 = vsel %vm367, %v1620, %v1622
      %vm1625 = vcmask 60416
      %1626 = vst.msk [vmem:[#allocation10] sm:$0xf] %vm1625, %v1623
    $region33: #{tpu_custom_call.1} parent=1 // pred_fallthru
      _
    // Predicated region
    $region34: #{tpu_custom_call.1} parent=1 // pred_check
      _
    $region35: #{tpu_custom_call.1} parent=1 // pred_check_branch
      %1628 = sbr.rel (0) target = $region37
    $region36: #{tpu_custom_call.1} parent=1 // pred_region
      %s1630 = ssub.s32 64, 64
      %1631 = vsyncadd [#allocation6], %s1630
      %s1633 = sshll.u32 [#allocation10], 4
      %s1634 = int_to_ptr.vmem [resolvable:$true] %s1633
      %1636 = dma.vmem_to_hbm [thread:$0]  %s1634, 64, %s3, [#allocation6]
    $region37: #{tpu_custom_call.1} parent=1 // pred_fallthru
      _
    // Predicated region
    $region38: #{tpu_custom_call.1} parent=1 // pred_check
      _
    $region39: #{tpu_custom_call.1} parent=1 // pred_check_branch
      %1638 = sbr.rel (0) target = $region41
    $region40: #{tpu_custom_call.1} parent=1 // pred_region
      %1639 = dma.done [#allocation6], 64
    $region41: #{tpu_custom_call.1} parent=1 // pred_fallthru
      _
    %1640 = vsyncpa [#allocation5], 1
    %1641 = vsyncpa [#allocation8], 1
    %1642 = vsyncpa [#allocation6], 1

</llo_original>
